<compile_context>
chip_gen: v6e
topology: v6e:2x2x1
jax: 0.10.0
libtpu: 0.0.40
codegen_flags: <defaults>
</compile_context>

<pallas_src>
import jax
import jax.numpy as jnp
from jax.experimental import pallas as pl
from jax.experimental.pallas import tpu as pltpu


# ------------------------------ fused kernel ------------------------------- #

def _fused_audio_cnn_kernel(p1_ref, wbd_ref, s1_ref, b1_ref,
                            m2_ref, s2_ref, b2_ref,
                            wfc1_ref, bfc1_ref, wfc2_ref, bfc2_ref,
                            o_ref, a1p_ref, feat_ref):
    # p1_ref  : (1, 4, Hq, Wq*C1)  conv1 patches, one pool tap per leading index
    # wbd_ref : (Wq*C1, Wq*C1)     block-diag conv1 weight (per output column)
    # m2_ref  : (3, Wq*C1, 2*Wo*C2) banded conv2 weight, one matrix per row tap
    # a1p_ref : (Hq+2, Wq*C1)      pooled conv1 activation with zero row ring
    # feat_ref: (1, Ho*Wo*C2)      flattened (i4, j4, c2) features
    Hq = p1_ref.shape[2]
    L2 = s2_ref.shape[1]
    Ho = Hq // 2
    half = L2 // 2                      # Wo * C2

    # conv1 + bn1 + relu, evaluated per 2x2 pool tap and max-reduced (= maxpool)
    pooled1 = None
    for t in range(4):
        y = jnp.dot(p1_ref[0, t], wbd_ref[...],
                    preferred_element_type=jnp.float32)          # (Hq, Wq*C1)
        y = jnp.maximum(y * s1_ref[...] + b1_ref[...], 0.0)
        pooled1 = y if pooled1 is None else jnp.maximum(pooled1, y)

    # stage pooled activation with a zero row-ring (height padding for conv2)
    a1p_ref[...] = jnp.zeros_like(a1p_ref)
    a1p_ref[1:1 + Hq, :] = pooled1

    # conv2 as 3 row-shifted banded GEMMs (width taps + Cin folded into K)
    acc = jnp.zeros((Hq, L2), jnp.float32)
    for di in range(3):
        acc = acc + jnp.dot(a1p_ref[di:di + Hq, :], m2_ref[di],
                            preferred_element_type=jnp.float32)   # (Hq, 2*Wo*C2)
    y2 = jnp.maximum(acc * s2_ref[...] + b2_ref[...], 0.0)

    # maxpool2: even/odd output columns live in the two lane halves -> one max;
    # row pairs are max-reduced straight into the flattened feature row.
    cp = jnp.maximum(y2[:, :half], y2[:, half:])                  # (Hq, Wo*C2)
    for i4 in range(Ho):
        feat_ref[0:1, i4 * half:(i4 + 1) * half] = jnp.maximum(
            cp[2 * i4:2 * i4 + 1, :], cp[2 * i4 + 1:2 * i4 + 2, :])

    # fc1 + relu + (dropout(p=0.3) is identity at inference) + fc2
    # TODO(synk): training-mode dropout RNG masking not implemented.
    h = jnp.maximum(
        jnp.dot(feat_ref[...], wfc1_ref[...],
                preferred_element_type=jnp.float32) + bfc1_ref[...], 0.0)
    o_ref[0] = jnp.dot(h, wfc2_ref[...],
                       preferred_element_type=jnp.float32) + bfc2_ref[...]


# ------------------------------ glue helpers ------------------------------- #

def fold_bn(conv_b, gamma, beta, mean, var, eps=1e-5):
    scale = gamma / jnp.sqrt(var + eps)
    bias = beta + scale * (conv_b - mean)
    return scale, bias


def audio_cnn_forward(params, x_nchw):
    x = x_nchw.astype(jnp.float32)
    B, Cin, H, W = x.shape
    assert Cin == 1 and H % 4 == 0 and W % 4 == 0
    C1, C2 = 16, 32
    Hq, Wq = H // 2, W // 2            # spatial after pool1
    Ho, Wo = Hq // 2, Wq // 2          # spatial after pool2
    L1 = Wq * C1                       # conv1 lane width (j2, c1)
    L2 = 2 * Wo * C2                   # conv2 lane width (pool-tap, j4, c2)
    NC = params["fc2_w"].shape[0]

    # conv1 pool-tap patches: p1[b, a*2+c, i2, j2*C1 + dd], dd = di*3+dj (K 9->16)
    xs = x[:, 0]
    xp = jnp.pad(xs, ((0, 0), (1, 1), (1, 1)))
    taps = []
    for a in range(2):
        for c in range(2):
            slabs = [xp[:, a + di: a + di + H: 2, c + dj: c + dj + W: 2]
                     for di in range(3) for dj in range(3)]        # each (B,Hq,Wq)
            s = jnp.stack(slabs, axis=-1)                          # (B,Hq,Wq,9)
            s = jnp.pad(s, ((0, 0), (0, 0), (0, 0), (0, C1 - 9)))  # K pad 9->16
            taps.append(s.reshape(B, Hq, L1))
    p1 = jnp.stack(taps, axis=1)                                   # (B,4,Hq,L1)

    # conv1 weight as block-diagonal GEMM RHS (one 16x16 block per output column)
    w1 = jnp.transpose(params["conv1_w"], (2, 3, 1, 0)).reshape(9, C1)
    w1 = jnp.pad(w1, ((0, C1 - 9), (0, 0)))                        # (16, 16)
    wbd = jnp.kron(jnp.eye(Wq, dtype=jnp.float32), w1)             # (L1, L1)

    s1, b1 = fold_bn(params["conv1_b"], params["bn1_gamma"], params["bn1_beta"],
                     params["bn1_mean"], params["bn1_var"])
    s1row = jnp.tile(s1, Wq).reshape(1, L1)
    b1row = jnp.tile(b1, Wq).reshape(1, L1)

    # conv2 banded weights: out column order = (pool-tap cpt, j4, c2)
    w2 = jnp.transpose(params["conv2_w"], (2, 3, 1, 0))            # (di,dj,ci,co)
    m2 = jnp.zeros((3, L1, L2), jnp.float32)
    for di in range(3):
        for j2 in range(Wq):
            j4, cpt = j2 // 2, j2 % 2
            col0 = cpt * (Wo * C2) + j4 * C2
            for dj in range(3):
                jsrc = j2 + dj - 1
                if 0 <= jsrc < Wq:
                    m2 = m2.at[di, jsrc * C1:(jsrc + 1) * C1,
                               col0:col0 + C2].set(w2[di, dj])

    s2, b2 = fold_bn(params["conv2_b"], params["bn2_gamma"], params["bn2_beta"],
                     params["bn2_mean"], params["bn2_var"])
    s2row = jnp.tile(s2, 2 * Wo).reshape(1, L2)
    b2row = jnp.tile(b2, 2 * Wo).reshape(1, L2)

    # fc weights permuted so the in-kernel (i4, j4, c2) feature order matches
    # PyTorch's NCHW flatten (c2, i4, j4).
    wfc1 = (params["fc1_w"].reshape(128, C2, Ho, Wo)
            .transpose(2, 3, 1, 0).reshape(Ho * Wo * C2, 128))
    bfc1 = params["fc1_b"].reshape(1, 128)
    wfc2 = params["fc2_w"].T                                        # (128, NC)
    bfc2 = params["fc2_b"].reshape(1, NC)

    out = pl.pallas_call(
        _fused_audio_cnn_kernel,
        out_shape=jax.ShapeDtypeStruct((B, 1, NC), jnp.float32),
        grid=(B,),
        in_specs=[
            pl.BlockSpec((1, 4, Hq, L1), lambda b: (b, 0, 0, 0)),   # p1
            pl.BlockSpec((L1, L1), lambda b: (0, 0)),               # wbd
            pl.BlockSpec((1, L1), lambda b: (0, 0)),                # s1
            pl.BlockSpec((1, L1), lambda b: (0, 0)),                # b1
            pl.BlockSpec((3, L1, L2), lambda b: (0, 0, 0)),         # m2
            pl.BlockSpec((1, L2), lambda b: (0, 0)),                # s2
            pl.BlockSpec((1, L2), lambda b: (0, 0)),                # b2
            pl.BlockSpec((Ho * Wo * C2, 128), lambda b: (0, 0)),    # fc1 w
            pl.BlockSpec((1, 128), lambda b: (0, 0)),               # fc1 b
            pl.BlockSpec((128, NC), lambda b: (0, 0)),              # fc2 w
            pl.BlockSpec((1, NC), lambda b: (0, 0)),                # fc2 b
        ],
        out_specs=pl.BlockSpec((1, 1, NC), lambda b: (b, 0, 0)),
        scratch_shapes=[
            pltpu.VMEM((Hq + 2, L1), jnp.float32),     # zero-ringed pool1 act
            pltpu.VMEM((1, Ho * Wo * C2), jnp.float32),  # flattened features
        ],
        compiler_params=pltpu.CompilerParams(
            dimension_semantics=("parallel",)),
    )(p1, wbd, s1row, b1row, m2, s2row, b2row, wfc1, bfc1, wfc2, bfc2)
    return out.reshape(B, NC)


def init_params(key, n_classes, mfcc_shape):
    H, W = mfcc_shape
    fc_in = 32 * (H // 4) * (W // 4)
    k = jax.random.split(key, 16)
    p = {}
    p["conv1_w"] = 0.2 * jax.random.normal(k[0], (16, 1, 3, 3), jnp.float32)
    p["conv1_b"] = 0.1 * jax.random.normal(k[1], (16,), jnp.float32)
    p["bn1_gamma"] = 1.0 + 0.1 * jax.random.normal(k[2], (16,), jnp.float32)
    p["bn1_beta"] = 0.1 * jax.random.normal(k[3], (16,), jnp.float32)
    p["bn1_mean"] = 0.1 * jax.random.normal(k[4], (16,), jnp.float32)
    p["bn1_var"] = jnp.abs(1.0 + 0.1 * jax.random.normal(k[5], (16,), jnp.float32))
    p["conv2_w"] = 0.1 * jax.random.normal(k[6], (32, 16, 3, 3), jnp.float32)
    p["conv2_b"] = 0.1 * jax.random.normal(k[7], (32,), jnp.float32)
    p["bn2_gamma"] = 1.0 + 0.1 * jax.random.normal(k[8], (32,), jnp.float32)
    p["bn2_beta"] = 0.1 * jax.random.normal(k[9], (32,), jnp.float32)
    p["bn2_mean"] = 0.1 * jax.random.normal(k[10], (32,), jnp.float32)
    p["bn2_var"] = jnp.abs(1.0 + 0.1 * jax.random.normal(k[11], (32,), jnp.float32))
    p["fc1_w"] = jax.random.normal(k[12], (128, fc_in), jnp.float32) / jnp.sqrt(fc_in)
    p["fc1_b"] = 0.1 * jax.random.normal(k[13], (128,), jnp.float32)
    p["fc2_w"] = jax.random.normal(k[14], (n_classes, 128), jnp.float32) / jnp.sqrt(128.0)
    p["fc2_b"] = 0.1 * jax.random.normal(k[15], (n_classes,), jnp.float32)
    return p


# -------------------------- pure-JAX reference ----------------------------- #

def reference_forward(params, x_nchw):
    x = jnp.transpose(x_nchw, (0, 2, 3, 1)).astype(jnp.float32)

    def block(x, w_pt, b, gamma, beta, mean, var):
        w = jnp.transpose(w_pt, (2, 3, 1, 0))
        y = jax.lax.conv_general_dilated(
            x, w, (1, 1), "SAME",
            dimension_numbers=("NHWC", "HWIO", "NHWC")) + b
        y = gamma / jnp.sqrt(var + 1e-5) * (y - mean) + beta
        y = jnp.maximum(y, 0.0)
        B, H, W, C = y.shape
        return y.reshape(B, H // 2, 2, W // 2, 2, C).max(axis=(2, 4))

    y = block(x, params["conv1_w"], params["conv1_b"], params["bn1_gamma"],
              params["bn1_beta"], params["bn1_mean"], params["bn1_var"])
    y = block(y, params["conv2_w"], params["conv2_b"], params["bn2_gamma"],
              params["bn2_beta"], params["bn2_mean"], params["bn2_var"])
    B = y.shape[0]
    feat = jnp.transpose(y, (0, 3, 1, 2)).reshape(B, -1)
    h = jnp.maximum(feat @ params["fc1_w"].T + params["fc1_b"], 0.0)
    return h @ params["fc2_w"].T + params["fc2_b"]


# ----------------------------------- main ----------------------------------- #

if __name__ == "__main__":
    n_classes = 8
    mfcc_shape = (16, 16)
    key = jax.random.PRNGKey(0)
    kp, kx = jax.random.split(key)

    params = init_params(kp, n_classes, mfcc_shape)
    x = jax.random.normal(kx, (2, 1, mfcc_shape[0], mfcc_shape[1]), jnp.float32)

    fwd = jax.jit(audio_cnn_forward)
    out = jax.block_until_ready(fwd(params, x))
    assert out.shape == (2, n_classes), out.shape

    ref = reference_forward(params, x)
    if not jnp.allclose(out, ref, rtol=1e-3, atol=1e-2):
        raise SystemExit(
            f"mismatch: max abs diff = {float(jnp.max(jnp.abs(out - ref)))}")

    print("KERNEL_OK")
</pallas_src>

<mosaic_0001>
module attributes {stable_mosaic.version = 11 : i64} {
  func.func @_fused_audio_cnn_kernel(%arg0: i32, %arg1: memref<1x4x8x128xf32, #tpu.memory_space<vmem>>, %arg2: memref<128x128xf32, #tpu.memory_space<vmem>>, %arg3: memref<1x128xf32, #tpu.memory_space<vmem>>, %arg4: memref<1x128xf32, #tpu.memory_space<vmem>>, %arg5: memref<3x128x256xf32, #tpu.memory_space<vmem>>, %arg6: memref<1x256xf32, #tpu.memory_space<vmem>>, %arg7: memref<1x256xf32, #tpu.memory_space<vmem>>, %arg8: memref<512x128xf32, #tpu.memory_space<vmem>>, %arg9: memref<1x128xf32, #tpu.memory_space<vmem>>, %arg10: memref<128x8xf32, #tpu.memory_space<vmem>>, %arg11: memref<1x8xf32, #tpu.memory_space<vmem>>, %arg12: memref<1x1x8xf32, #tpu.memory_space<vmem>>, %arg13: memref<10x128xf32, #tpu.memory_space<vmem>>, %arg14: memref<1x512xf32, #tpu.memory_space<vmem>>) attributes {dimension_semantics = [#tpu.dimension_semantics<parallel>], iteration_bounds = array<i64: 2>, scalar_prefetch = 0 : i64, scratch_operands = 2 : i64, tpu.core_type = #tpu.core_type<tc>, window_params = [{transform_indices = @transform_0, window_bounds = array<i64: 1, 4, 8, 128>}, {pipeline_mode = #tpu.pipeline_mode<synchronous>, transform_indices = @transform_1, window_bounds = array<i64: 128, 128>}, {pipeline_mode = #tpu.pipeline_mode<synchronous>, transform_indices = @transform_2, window_bounds = array<i64: 1, 128>}, {pipeline_mode = #tpu.pipeline_mode<synchronous>, transform_indices = @transform_3, window_bounds = array<i64: 1, 128>}, {pipeline_mode = #tpu.pipeline_mode<synchronous>, transform_indices = @transform_4, window_bounds = array<i64: 3, 128, 256>}, {pipeline_mode = #tpu.pipeline_mode<synchronous>, transform_indices = @transform_5, window_bounds = array<i64: 1, 256>}, {pipeline_mode = #tpu.pipeline_mode<synchronous>, transform_indices = @transform_6, window_bounds = array<i64: 1, 256>}, {pipeline_mode = #tpu.pipeline_mode<synchronous>, transform_indices = @transform_7, window_bounds = array<i64: 512, 128>}, {pipeline_mode = #tpu.pipeline_mode<synchronous>, transform_indices = @transform_8, window_bounds = array<i64: 1, 128>}, {pipeline_mode = #tpu.pipeline_mode<synchronous>, transform_indices = @transform_9, window_bounds = array<i64: 128, 8>}, {pipeline_mode = #tpu.pipeline_mode<synchronous>, transform_indices = @transform_10, window_bounds = array<i64: 1, 8>}, {transform_indices = @transform_11, window_bounds = array<i64: 1, 1, 8>}]} {
    %c0 = arith.constant 0 : index
    %c0_0 = arith.constant 0 : index
    %c0_1 = arith.constant 0 : index
    %c0_2 = arith.constant 0 : index
    %0 = vector.load %arg1[%c0, %c0_0, %c0_1, %c0_2] : memref<1x4x8x128xf32, #tpu.memory_space<vmem>>, vector<1x1x8x128xf32>
    %1 = vector.shape_cast %0 : vector<1x1x8x128xf32> to vector<8x128xf32>
    %c0_3 = arith.constant 0 : index
    %c0_4 = arith.constant 0 : index
    %2 = vector.load %arg2[%c0_3, %c0_4] : memref<128x128xf32, #tpu.memory_space<vmem>>, vector<128x128xf32>
    %cst = arith.constant dense<0.000000e+00> : vector<8x128xf32>
    %3 = tpu.matmul %1, %2, %cst {dimension_numbers = #tpu.dot_dimension_numbers<[1], [0], [0], [1], [0, 0, 1, 1], [], []>} : vector<8x128xf32>, vector<128x128xf32>, vector<8x128xf32> -> vector<8x128xf32>
    %c0_5 = arith.constant 0 : index
    %c0_6 = arith.constant 0 : index
    %4 = vector.load %arg3[%c0_5, %c0_6] : memref<1x128xf32, #tpu.memory_space<vmem>>, vector<1x128xf32>
    %5 = vector.broadcast %4 : vector<1x128xf32> to vector<8x128xf32>
    %6 = arith.mulf %3, %5 : vector<8x128xf32>
    %c0_7 = arith.constant 0 : index
    %c0_8 = arith.constant 0 : index
    %7 = vector.load %arg4[%c0_7, %c0_8] : memref<1x128xf32, #tpu.memory_space<vmem>>, vector<1x128xf32>
    %8 = vector.broadcast %7 : vector<1x128xf32> to vector<8x128xf32>
    %9 = arith.addf %6, %8 : vector<8x128xf32>
    %cst_9 = arith.constant 0.000000e+00 : f32
    %10 = vector.broadcast %cst_9 : f32 to vector<8x128xf32>
    %11 = arith.maximumf %9, %10 : vector<8x128xf32>
    %c0_10 = arith.constant 0 : index
    %c1 = arith.constant 1 : index
    %c0_11 = arith.constant 0 : index
    %c0_12 = arith.constant 0 : index
    %12 = vector.load %arg1[%c0_10, %c1, %c0_11, %c0_12] : memref<1x4x8x128xf32, #tpu.memory_space<vmem>>, vector<1x1x8x128xf32>
    %13 = vector.shape_cast %12 : vector<1x1x8x128xf32> to vector<8x128xf32>
    %c0_13 = arith.constant 0 : index
    %c0_14 = arith.constant 0 : index
    %14 = vector.load %arg2[%c0_13, %c0_14] : memref<128x128xf32, #tpu.memory_space<vmem>>, vector<128x128xf32>
    %cst_15 = arith.constant dense<0.000000e+00> : vector<8x128xf32>
    %15 = tpu.matmul %13, %14, %cst_15 {dimension_numbers = #tpu.dot_dimension_numbers<[1], [0], [0], [1], [0, 0, 1, 1], [], []>} : vector<8x128xf32>, vector<128x128xf32>, vector<8x128xf32> -> vector<8x128xf32>
    %c0_16 = arith.constant 0 : index
    %c0_17 = arith.constant 0 : index
    %16 = vector.load %arg3[%c0_16, %c0_17] : memref<1x128xf32, #tpu.memory_space<vmem>>, vector<1x128xf32>
    %17 = vector.broadcast %16 : vector<1x128xf32> to vector<8x128xf32>
    %18 = arith.mulf %15, %17 : vector<8x128xf32>
    %c0_18 = arith.constant 0 : index
    %c0_19 = arith.constant 0 : index
    %19 = vector.load %arg4[%c0_18, %c0_19] : memref<1x128xf32, #tpu.memory_space<vmem>>, vector<1x128xf32>
    %20 = vector.broadcast %19 : vector<1x128xf32> to vector<8x128xf32>
    %21 = arith.addf %18, %20 : vector<8x128xf32>
    %cst_20 = arith.constant 0.000000e+00 : f32
    %22 = vector.broadcast %cst_20 : f32 to vector<8x128xf32>
    %23 = arith.maximumf %21, %22 : vector<8x128xf32>
    %24 = arith.maximumf %11, %23 : vector<8x128xf32>
    %c0_21 = arith.constant 0 : index
    %c2 = arith.constant 2 : index
    %c0_22 = arith.constant 0 : index
    %c0_23 = arith.constant 0 : index
    %25 = vector.load %arg1[%c0_21, %c2, %c0_22, %c0_23] : memref<1x4x8x128xf32, #tpu.memory_space<vmem>>, vector<1x1x8x128xf32>
    %26 = vector.shape_cast %25 : vector<1x1x8x128xf32> to vector<8x128xf32>
    %c0_24 = arith.constant 0 : index
    %c0_25 = arith.constant 0 : index
    %27 = vector.load %arg2[%c0_24, %c0_25] : memref<128x128xf32, #tpu.memory_space<vmem>>, vector<128x128xf32>
    %cst_26 = arith.constant dense<0.000000e+00> : vector<8x128xf32>
    %28 = tpu.matmul %26, %27, %cst_26 {dimension_numbers = #tpu.dot_dimension_numbers<[1], [0], [0], [1], [0, 0, 1, 1], [], []>} : vector<8x128xf32>, vector<128x128xf32>, vector<8x128xf32> -> vector<8x128xf32>
    %c0_27 = arith.constant 0 : index
    %c0_28 = arith.constant 0 : index
    %29 = vector.load %arg3[%c0_27, %c0_28] : memref<1x128xf32, #tpu.memory_space<vmem>>, vector<1x128xf32>
    %30 = vector.broadcast %29 : vector<1x128xf32> to vector<8x128xf32>
    %31 = arith.mulf %28, %30 : vector<8x128xf32>
    %c0_29 = arith.constant 0 : index
    %c0_30 = arith.constant 0 : index
    %32 = vector.load %arg4[%c0_29, %c0_30] : memref<1x128xf32, #tpu.memory_space<vmem>>, vector<1x128xf32>
    %33 = vector.broadcast %32 : vector<1x128xf32> to vector<8x128xf32>
    %34 = arith.addf %31, %33 : vector<8x128xf32>
    %cst_31 = arith.constant 0.000000e+00 : f32
    %35 = vector.broadcast %cst_31 : f32 to vector<8x128xf32>
    %36 = arith.maximumf %34, %35 : vector<8x128xf32>
    %37 = arith.maximumf %24, %36 : vector<8x128xf32>
    %c0_32 = arith.constant 0 : index
    %c3 = arith.constant 3 : index
    %c0_33 = arith.constant 0 : index
    %c0_34 = arith.constant 0 : index
    %38 = vector.load %arg1[%c0_32, %c3, %c0_33, %c0_34] : memref<1x4x8x128xf32, #tpu.memory_space<vmem>>, vector<1x1x8x128xf32>
    %39 = vector.shape_cast %38 : vector<1x1x8x128xf32> to vector<8x128xf32>
    %c0_35 = arith.constant 0 : index
    %c0_36 = arith.constant 0 : index
    %40 = vector.load %arg2[%c0_35, %c0_36] : memref<128x128xf32, #tpu.memory_space<vmem>>, vector<128x128xf32>
    %cst_37 = arith.constant dense<0.000000e+00> : vector<8x128xf32>
    %41 = tpu.matmul %39, %40, %cst_37 {dimension_numbers = #tpu.dot_dimension_numbers<[1], [0], [0], [1], [0, 0, 1, 1], [], []>} : vector<8x128xf32>, vector<128x128xf32>, vector<8x128xf32> -> vector<8x128xf32>
    %c0_38 = arith.constant 0 : index
    %c0_39 = arith.constant 0 : index
    %42 = vector.load %arg3[%c0_38, %c0_39] : memref<1x128xf32, #tpu.memory_space<vmem>>, vector<1x128xf32>
    %43 = vector.broadcast %42 : vector<1x128xf32> to vector<8x128xf32>
    %44 = arith.mulf %41, %43 : vector<8x128xf32>
    %c0_40 = arith.constant 0 : index
    %c0_41 = arith.constant 0 : index
    %45 = vector.load %arg4[%c0_40, %c0_41] : memref<1x128xf32, #tpu.memory_space<vmem>>, vector<1x128xf32>
    %46 = vector.broadcast %45 : vector<1x128xf32> to vector<8x128xf32>
    %47 = arith.addf %44, %46 : vector<8x128xf32>
    %cst_42 = arith.constant 0.000000e+00 : f32
    %48 = vector.broadcast %cst_42 : f32 to vector<8x128xf32>
    %49 = arith.maximumf %47, %48 : vector<8x128xf32>
    %50 = arith.maximumf %37, %49 : vector<8x128xf32>
    %cst_43 = arith.constant 0.000000e+00 : f32
    %51 = vector.broadcast %cst_43 : f32 to vector<10x128xf32>
    %c0_44 = arith.constant 0 : index
    %c0_45 = arith.constant 0 : index
    %52 = vector.load %arg13[%c0_44, %c0_45] : memref<10x128xf32, #tpu.memory_space<vmem>>, vector<10x128xf32>
    tpu.vector_store %arg13[%c0_44, %c0_45], %51 {strides = array<i32>} : memref<10x128xf32, #tpu.memory_space<vmem>>, vector<10x128xf32>,
    %c1_46 = arith.constant 1 : index
    %c0_47 = arith.constant 0 : index
    %53 = vector.load %arg13[%c1_46, %c0_47] : memref<10x128xf32, #tpu.memory_space<vmem>>, vector<8x128xf32>
    tpu.vector_store %arg13[%c1_46, %c0_47], %50 {strides = array<i32>} : memref<10x128xf32, #tpu.memory_space<vmem>>, vector<8x128xf32>,
    %cst_48 = arith.constant 0.000000e+00 : f32
    %54 = vector.broadcast %cst_48 : f32 to vector<8x256xf32>
    %c0_49 = arith.constant 0 : index
    %c0_50 = arith.constant 0 : index
    %55 = vector.load %arg13[%c0_49, %c0_50] : memref<10x128xf32, #tpu.memory_space<vmem>>, vector<8x128xf32>
    %c0_51 = arith.constant 0 : index
    %c0_52 = arith.constant 0 : index
    %c0_53 = arith.constant 0 : index
    %56 = vector.load %arg5[%c0_51, %c0_52, %c0_53] : memref<3x128x256xf32, #tpu.memory_space<vmem>>, vector<1x128x256xf32>
    %57 = vector.shape_cast %56 : vector<1x128x256xf32> to vector<128x256xf32>
    %cst_54 = arith.constant dense<0.000000e+00> : vector<8x256xf32>
    %58 = tpu.matmul %55, %57, %cst_54 {dimension_numbers = #tpu.dot_dimension_numbers<[1], [0], [0], [1], [0, 0, 1, 1], [], []>} : vector<8x128xf32>, vector<128x256xf32>, vector<8x256xf32> -> vector<8x256xf32>
    %59 = arith.addf %54, %58 : vector<8x256xf32>
    %c1_55 = arith.constant 1 : index
    %c0_56 = arith.constant 0 : index
    %60 = vector.load %arg13[%c1_55, %c0_56] : memref<10x128xf32, #tpu.memory_space<vmem>>, vector<8x128xf32>
    %c1_57 = arith.constant 1 : index
    %c0_58 = arith.constant 0 : index
    %c0_59 = arith.constant 0 : index
    %61 = vector.load %arg5[%c1_57, %c0_58, %c0_59] : memref<3x128x256xf32, #tpu.memory_space<vmem>>, vector<1x128x256xf32>
    %62 = vector.shape_cast %61 : vector<1x128x256xf32> to vector<128x256xf32>
    %cst_60 = arith.constant dense<0.000000e+00> : vector<8x256xf32>
    %63 = tpu.matmul %60, %62, %cst_60 {dimension_numbers = #tpu.dot_dimension_numbers<[1], [0], [0], [1], [0, 0, 1, 1], [], []>} : vector<8x128xf32>, vector<128x256xf32>, vector<8x256xf32> -> vector<8x256xf32>
    %64 = arith.addf %59, %63 : vector<8x256xf32>
    %c2_61 = arith.constant 2 : index
    %c0_62 = arith.constant 0 : index
    %65 = vector.load %arg13[%c2_61, %c0_62] : memref<10x128xf32, #tpu.memory_space<vmem>>, vector<8x128xf32>
    %c2_63 = arith.constant 2 : index
    %c0_64 = arith.constant 0 : index
    %c0_65 = arith.constant 0 : index
    %66 = vector.load %arg5[%c2_63, %c0_64, %c0_65] : memref<3x128x256xf32, #tpu.memory_space<vmem>>, vector<1x128x256xf32>
    %67 = vector.shape_cast %66 : vector<1x128x256xf32> to vector<128x256xf32>
    %cst_66 = arith.constant dense<0.000000e+00> : vector<8x256xf32>
    %68 = tpu.matmul %65, %67, %cst_66 {dimension_numbers = #tpu.dot_dimension_numbers<[1], [0], [0], [1], [0, 0, 1, 1], [], []>} : vector<8x128xf32>, vector<128x256xf32>, vector<8x256xf32> -> vector<8x256xf32>
    %69 = arith.addf %64, %68 : vector<8x256xf32>
    %c0_67 = arith.constant 0 : index
    %c0_68 = arith.constant 0 : index
    %70 = vector.load %arg6[%c0_67, %c0_68] : memref<1x256xf32, #tpu.memory_space<vmem>>, vector<1x256xf32>
    %71 = vector.broadcast %70 : vector<1x256xf32> to vector<8x256xf32>
    %72 = arith.mulf %69, %71 : vector<8x256xf32>
    %c0_69 = arith.constant 0 : index
    %c0_70 = arith.constant 0 : index
    %73 = vector.load %arg7[%c0_69, %c0_70] : memref<1x256xf32, #tpu.memory_space<vmem>>, vector<1x256xf32>
    %74 = vector.broadcast %73 : vector<1x256xf32> to vector<8x256xf32>
    %75 = arith.addf %72, %74 : vector<8x256xf32>
    %cst_71 = arith.constant 0.000000e+00 : f32
    %76 = vector.broadcast %cst_71 : f32 to vector<8x256xf32>
    %77 = arith.maximumf %75, %76 : vector<8x256xf32>
    %78 = vector.extract_strided_slice %77 {offsets = [0, 0], sizes = [8, 128], strides = [1, 1]} : vector<8x256xf32> to vector<8x128xf32>
    %79 = vector.extract_strided_slice %77 {offsets = [0, 128], sizes = [8, 128], strides = [1, 1]} : vector<8x256xf32> to vector<8x128xf32>
    %80 = arith.maximumf %78, %79 : vector<8x128xf32>
    %81 = vector.extract_strided_slice %80 {offsets = [0, 0], sizes = [1, 128], strides = [1, 1]} : vector<8x128xf32> to vector<1x128xf32>
    %82 = vector.extract_strided_slice %80 {offsets = [1, 0], sizes = [1, 128], strides = [1, 1]} : vector<8x128xf32> to vector<1x128xf32>
    %83 = arith.maximumf %81, %82 : vector<1x128xf32>
    %c0_72 = arith.constant 0 : index
    %c0_73 = arith.constant 0 : index
    %84 = vector.load %arg14[%c0_72, %c0_73] : memref<1x512xf32, #tpu.memory_space<vmem>>, vector<1x128xf32>
    tpu.vector_store %arg14[%c0_72, %c0_73], %83 {strides = array<i32>} : memref<1x512xf32, #tpu.memory_space<vmem>>, vector<1x128xf32>,
    %85 = vector.extract_strided_slice %80 {offsets = [2, 0], sizes = [1, 128], strides = [1, 1]} : vector<8x128xf32> to vector<1x128xf32>
    %86 = vector.extract_strided_slice %80 {offsets = [3, 0], sizes = [1, 128], strides = [1, 1]} : vector<8x128xf32> to vector<1x128xf32>
    %87 = arith.maximumf %85, %86 : vector<1x128xf32>
    %c0_74 = arith.constant 0 : index
    %c128 = arith.constant 128 : index
    %88 = vector.load %arg14[%c0_74, %c128] : memref<1x512xf32, #tpu.memory_space<vmem>>, vector<1x128xf32>
    tpu.vector_store %arg14[%c0_74, %c128], %87 {strides = array<i32>} : memref<1x512xf32, #tpu.memory_space<vmem>>, vector<1x128xf32>,
    %89 = vector.extract_strided_slice %80 {offsets = [4, 0], sizes = [1, 128], strides = [1, 1]} : vector<8x128xf32> to vector<1x128xf32>
    %90 = vector.extract_strided_slice %80 {offsets = [5, 0], sizes = [1, 128], strides = [1, 1]} : vector<8x128xf32> to vector<1x128xf32>
    %91 = arith.maximumf %89, %90 : vector<1x128xf32>
    %c0_75 = arith.constant 0 : index
    %c256 = arith.constant 256 : index
    %92 = vector.load %arg14[%c0_75, %c256] : memref<1x512xf32, #tpu.memory_space<vmem>>, vector<1x128xf32>
    tpu.vector_store %arg14[%c0_75, %c256], %91 {strides = array<i32>} : memref<1x512xf32, #tpu.memory_space<vmem>>, vector<1x128xf32>,
    %93 = vector.extract_strided_slice %80 {offsets = [6, 0], sizes = [1, 128], strides = [1, 1]} : vector<8x128xf32> to vector<1x128xf32>
    %94 = vector.extract_strided_slice %80 {offsets = [7, 0], sizes = [1, 128], strides = [1, 1]} : vector<8x128xf32> to vector<1x128xf32>
    %95 = arith.maximumf %93, %94 : vector<1x128xf32>
    %c0_76 = arith.constant 0 : index
    %c384 = arith.constant 384 : index
    %96 = vector.load %arg14[%c0_76, %c384] : memref<1x512xf32, #tpu.memory_space<vmem>>, vector<1x128xf32>
    tpu.vector_store %arg14[%c0_76, %c384], %95 {strides = array<i32>} : memref<1x512xf32, #tpu.memory_space<vmem>>, vector<1x128xf32>,
    %c0_77 = arith.constant 0 : index
    %c0_78 = arith.constant 0 : index
    %97 = vector.load %arg14[%c0_77, %c0_78] : memref<1x512xf32, #tpu.memory_space<vmem>>, vector<1x512xf32>
    %c0_79 = arith.constant 0 : index
    %c0_80 = arith.constant 0 : index
    %98 = vector.load %arg8[%c0_79, %c0_80] : memref<512x128xf32, #tpu.memory_space<vmem>>, vector<512x128xf32>
    %cst_81 = arith.constant dense<0.000000e+00> : vector<1x128xf32>
    %99 = tpu.matmul %97, %98, %cst_81 {dimension_numbers = #tpu.dot_dimension_numbers<[1], [0], [0], [1], [0, 0, 1, 1], [], []>} : vector<1x512xf32>, vector<512x128xf32>, vector<1x128xf32> -> vector<1x128xf32>
    %c0_82 = arith.constant 0 : index
    %c0_83 = arith.constant 0 : index
    %100 = vector.load %arg9[%c0_82, %c0_83] : memref<1x128xf32, #tpu.memory_space<vmem>>, vector<1x128xf32>
    %101 = arith.addf %99, %100 : vector<1x128xf32>
    %cst_84 = arith.constant 0.000000e+00 : f32
    %102 = vector.broadcast %cst_84 : f32 to vector<1x128xf32>
    %103 = arith.maximumf %101, %102 : vector<1x128xf32>
    %c0_85 = arith.constant 0 : index
    %c0_86 = arith.constant 0 : index
    %104 = vector.load %arg10[%c0_85, %c0_86] : memref<128x8xf32, #tpu.memory_space<vmem>>, vector<128x8xf32>
    %cst_87 = arith.constant dense<0.000000e+00> : vector<1x8xf32>
    %105 = tpu.matmul %103, %104, %cst_87 {dimension_numbers = #tpu.dot_dimension_numbers<[1], [0], [0], [1], [0, 0, 1, 1], [], []>} : vector<1x128xf32>, vector<128x8xf32>, vector<1x8xf32> -> vector<1x8xf32>
    %c0_88 = arith.constant 0 : index
    %c0_89 = arith.constant 0 : index
    %106 = vector.load %arg11[%c0_88, %c0_89] : memref<1x8xf32, #tpu.memory_space<vmem>>, vector<1x8xf32>
    %107 = arith.addf %105, %106 : vector<1x8xf32>
    %c0_90 = arith.constant 0 : index
    %c0_91 = arith.constant 0 : index
    %c0_92 = arith.constant 0 : index
    %108 = vector.load %arg12[%c0_90, %c0_91, %c0_92] : memref<1x1x8xf32, #tpu.memory_space<vmem>>, vector<1x1x8xf32>
    %109 = vector.shape_cast %108 : vector<1x1x8xf32> to vector<1x8xf32>
    %110 = vector.shape_cast %107 : vector<1x8xf32> to vector<1x1x8xf32>
    tpu.vector_store %arg12[%c0_90, %c0_91, %c0_92], %110 {strides = array<i32>} : memref<1x1x8xf32, #tpu.memory_space<vmem>>, vector<1x1x8xf32>,
    return
  }
  func.func @transform_0(%arg0: i32) -> (i32, i32, i32, i32) {
    %c0_i32 = arith.constant 0 : i32
    %c0_i32_0 = arith.constant 0 : i32
    %c0_i32_1 = arith.constant 0 : i32
    %c0_i32_2 = arith.constant 0 : i32
    return %arg0, %c0_i32, %c0_i32_0, %c0_i32_1 : i32, i32, i32, i32
  }
  func.func @transform_1(%arg0: i32) -> (i32, i32) {
    %c0_i32 = arith.constant 0 : i32
    %c0_i32_0 = arith.constant 0 : i32
    %c0_i32_1 = arith.constant 0 : i32
    return %c0_i32, %c0_i32_0 : i32, i32
  }
  func.func @transform_2(%arg0: i32) -> (i32, i32) {
    %c0_i32 = arith.constant 0 : i32
    %c0_i32_0 = arith.constant 0 : i32
    %c0_i32_1 = arith.constant 0 : i32
    return %c0_i32, %c0_i32_0 : i32, i32
  }
  func.func @transform_3(%arg0: i32) -> (i32, i32) {
    %c0_i32 = arith.constant 0 : i32
    %c0_i32_0 = arith.constant 0 : i32
    %c0_i32_1 = arith.constant 0 : i32
    return %c0_i32, %c0_i32_0 : i32, i32
  }
  func.func @transform_4(%arg0: i32) -> (i32, i32, i32) {
    %c0_i32 = arith.constant 0 : i32
    %c0_i32_0 = arith.constant 0 : i32
    %c0_i32_1 = arith.constant 0 : i32
    %c0_i32_2 = arith.constant 0 : i32
    return %c0_i32, %c0_i32_0, %c0_i32_1 : i32, i32, i32
  }
  func.func @transform_5(%arg0: i32) -> (i32, i32) {
    %c0_i32 = arith.constant 0 : i32
    %c0_i32_0 = arith.constant 0 : i32
    %c0_i32_1 = arith.constant 0 : i32
    return %c0_i32, %c0_i32_0 : i32, i32
  }
  func.func @transform_6(%arg0: i32) -> (i32, i32) {
    %c0_i32 = arith.constant 0 : i32
    %c0_i32_0 = arith.constant 0 : i32
    %c0_i32_1 = arith.constant 0 : i32
    return %c0_i32, %c0_i32_0 : i32, i32
  }
  func.func @transform_7(%arg0: i32) -> (i32, i32) {
    %c0_i32 = arith.constant 0 : i32
    %c0_i32_0 = arith.constant 0 : i32
    %c0_i32_1 = arith.constant 0 : i32
    return %c0_i32, %c0_i32_0 : i32, i32
  }
  func.func @transform_8(%arg0: i32) -> (i32, i32) {
    %c0_i32 = arith.constant 0 : i32
    %c0_i32_0 = arith.constant 0 : i32
    %c0_i32_1 = arith.constant 0 : i32
    return %c0_i32, %c0_i32_0 : i32, i32
  }
  func.func @transform_9(%arg0: i32) -> (i32, i32) {
    %c0_i32 = arith.constant 0 : i32
    %c0_i32_0 = arith.constant 0 : i32
    %c0_i32_1 = arith.constant 0 : i32
    return %c0_i32, %c0_i32_0 : i32, i32
  }
  func.func @transform_10(%arg0: i32) -> (i32, i32) {
    %c0_i32 = arith.constant 0 : i32
    %c0_i32_0 = arith.constant 0 : i32
    %c0_i32_1 = arith.constant 0 : i32
    return %c0_i32, %c0_i32_0 : i32, i32
  }
  func.func @transform_11(%arg0: i32) -> (i32, i32, i32) {
    %c0_i32 = arith.constant 0 : i32
    %c0_i32_0 = arith.constant 0 : i32
    %c0_i32_1 = arith.constant 0 : i32
    return %arg0, %c0_i32, %c0_i32_0 : i32, i32, i32
  }
}

</mosaic_0001>

<llo_original>
// kernel: tile.33
$region0: #{tile.33}
  #allocation0 [shape = 's32[1]{0}', space=sflag, size = 0x4, scoped, tag = 'scoped memory for tile.33']
  %s0 = inlined_call_operand.vmem [shape: f32[32], index: 0, kind: input, shape index: {}]
  %s1 = inlined_call_operand.vmem [shape: f32[8,32], index: 1, kind: output, shape index: {}]
  // Predicated region
  $region2: #{tile.33} parent=0 // pred_check
    _
  $region3: #{tile.33} parent=0 // pred_check_branch
    %3 = sbr.rel (0) target = $region5
  $region4: #{tile.33} parent=0 // pred_region
    _
  $region5: #{tile.33} parent=0 // pred_fallthru
    _
  %v4 = vld [vmem:[%s0] ss:$0 sm:$0xff]
  %5 = vst [vmem:[%s1] sm:$0xff] %v4

// kernel: tile.34
$region0: #{tile.34}
  %s0 = inlined_call_operand.vmem [shape: f32[8,32], index: 0, kind: input, shape index: {}]
  %s1 = inlined_call_operand.vmem [shape: f32[1,256], index: 1, kind: output, shape index: {}]
  $region1: #{tile.34} parent=0
    #allocation0 [shape = 'u8[8192]{0}', space=vmem, size = 0x2000, scoped, tag = 'scoped mem for output reshape']
    %s2 = smov 3
    %v3 = vld [vmem:[%s0] ss:$4 sm:%s2]
    %vm4 = vcmask 261120
    %5 = vst.msk [vmem:[#allocation0] ss:$8 sm:$0x3] %vm4, %v3
    %s6 = scalar_lea.vmem %s0, 3
    %s7 = smov 3
    %v8 = vld [vmem:[%s6] ss:$4 sm:%s7]
    %9 = vrot.lane.b32.xlu0 %v8, 96
    %v10 = vpop.permute.xlu0 %9
    %vm11 = vcmask 1048320
    %12 = vst.msk [vmem:[#allocation0] ss:$8 sm:$0x3] %vm11, %v10
    %s13 = scalar_lea.vmem %s0, 2
    %s14 = smov 3
    %v15 = vld [vmem:[%s13] ss:$4 sm:%s14]
    %16 = vrot.lane.b32.xlu0 %v15, 64
    %v17 = vpop.permute.xlu0 %16
    %vm18 = vcmask 785920
    %19 = vst.msk [vmem:[#allocation0] ss:$8 sm:$0x3] %vm18, %v17
    %s20 = scalar_lea.vmem %s0, 1
    %s21 = smov 3
    %v22 = vld [vmem:[%s20] ss:$4 sm:%s21]
    %23 = vrot.lane.b32.xlu0 %v22, 32
    %v24 = vpop.permute.xlu0 %23
    %vm25 = vcmask 523520
    %26 = vst.msk [vmem:[#allocation0] ss:$8 sm:$0x3] %vm25, %v24
    %s28 = sshll.u32 1, 1
    %s29 = ssub.s32 %s28, 1
    %v31 = vld [vmem:[#allocation0] sm:%s29]
    %s32 = sshll.u32 1, 1
    %s33 = ssub.s32 %s32, 1
    %34 = vst [vmem:[%s1] sm:%s33] %v31
    %s35 = scalar_lea.vmem [#allocation0], 8
    %v36 = vld [vmem:[%s35] sm:%s29]
    %s37 = sshll.u32 1, 1
    %s38 = ssub.s32 %s37, 1
    %s39 = scalar_lea.vmem %s1, 1
    %40 = vst [vmem:[%s39] sm:%s38] %v36

// kernel: tile.23
$region0: #{tile.23}
  #allocation0 [shape = 's32[1]{0}', space=sflag, size = 0x4, scoped, tag = 'scoped memory for tile.23']
  %s0 = inlined_call_operand.vmem [shape: f32[16], index: 0, kind: input, shape index: {}]
  %s1 = inlined_call_operand.vmem [shape: f32[8,16], index: 1, kind: output, shape index: {}]
  // Predicated region
  $region2: #{tile.23} parent=0 // pred_check
    _
  $region3: #{tile.23} parent=0 // pred_check_branch
    %3 = sbr.rel (0) target = $region5
  $region4: #{tile.23} parent=0 // pred_region
    _
  $region5: #{tile.23} parent=0 // pred_fallthru
    _
  %v4 = vld [vmem:[%s0] ss:$0 sm:$0xff]
  %5 = vst [vmem:[%s1] sm:$0xff] %v4

// kernel: tile.24
$region0: #{tile.24}
  %s0 = inlined_call_operand.vmem [shape: f32[8,16], index: 0, kind: input, shape index: {}]
  %s1 = inlined_call_operand.vmem [shape: f32[1,128], index: 1, kind: output, shape index: {}]
  $region1: #{tile.24} parent=0
    #allocation0 [shape = 'u8[4096]{0}', space=vmem, size = 0x1000, scoped, tag = 'scoped mem for output reshape']
    %v2 = vld [vmem:[%s0] sm:$0x1]
    %vm3 = vcmask 130048
    %4 = vst.msk [vmem:[#allocation0] sm:$0x1] %vm3, %v2
    %s5 = scalar_lea.vmem %s0, 7
    %v6 = vld [vmem:[%s5] sm:$0x1]
    %7 = vrot.lane.b32.xlu0 %v6, 112
    %v8 = vpop.permute.xlu0 %7
    %vm9 = vcmask 1048448
    %10 = vst.msk [vmem:[#allocation0] sm:$0x1] %vm9, %v8
    %s11 = scalar_lea.vmem %s0, 6
    %v12 = vld [vmem:[%s11] sm:$0x1]
    %13 = vrot.lane.b32.xlu0 %v12, 96
    %v14 = vpop.permute.xlu0 %13
    %vm15 = vcmask 917248
    %16 = vst.msk [vmem:[#allocation0] sm:$0x1] %vm15, %v14
    %s17 = scalar_lea.vmem %s0, 5
    %v18 = vld [vmem:[%s17] sm:$0x1]
    %19 = vrot.lane.b32.xlu0 %v18, 80
    %v20 = vpop.permute.xlu0 %19
    %vm21 = vcmask 786048
    %22 = vst.msk [vmem:[#allocation0] sm:$0x1] %vm21, %v20
    %s23 = scalar_lea.vmem %s0, 4
    %v24 = vld [vmem:[%s23] sm:$0x1]
    %25 = vrot.lane.b32.xlu0 %v24, 64
    %v26 = vpop.permute.xlu0 %25
    %vm27 = vcmask 654848
    %28 = vst.msk [vmem:[#allocation0] sm:$0x1] %vm27, %v26
    %s29 = scalar_lea.vmem %s0, 3
    %v30 = vld [vmem:[%s29] sm:$0x1]
    %31 = vrot.lane.b32.xlu0 %v30, 48
    %v32 = vpop.permute.xlu0 %31
    %vm33 = vcmask 523648
    %34 = vst.msk [vmem:[#allocation0] sm:$0x1] %vm33, %v32
    %s35 = scalar_lea.vmem %s0, 2
    %v36 = vld [vmem:[%s35] sm:$0x1]
    %37 = vrot.lane.b32.xlu0 %v36, 32
    %v38 = vpop.permute.xlu0 %37
    %vm39 = vcmask 392448
    %40 = vst.msk [vmem:[#allocation0] sm:$0x1] %vm39, %v38
    %s41 = scalar_lea.vmem %s0, 1
    %v42 = vld [vmem:[%s41] sm:$0x1]
    %43 = vrot.lane.b32.xlu0 %v42, 16
    %v44 = vpop.permute.xlu0 %43
    %vm45 = vcmask 261248
    %46 = vst.msk [vmem:[#allocation0] sm:$0x1] %vm45, %v44
    %s48 = sshll.u32 1, 1
    %s49 = ssub.s32 %s48, 1
    %v51 = vld [vmem:[#allocation0] sm:%s49]
    %s52 = sshll.u32 1, 1
    %s53 = ssub.s32 %s52, 1
    %54 = vst [vmem:[%s1] sm:%s53] %v51

// kernel: audio_cnn_forward.1
$region0: #{audio_cnn_forward.1}
  #allocation0 [shape = 'u32[]', space=smem, size = 0x4, offset = 0x4, fixed_abs, tag = 'smem constant byte address 0x4 - core index']
  #allocation1 [shape = 'u32[144,128]{1,0:T(1,128)}', space=vmem, size = 0x12000, scoped, tag = 'internal scratch']
  #allocation2 [shape = 'f32[10,128]{1,0:T(8,128)}', space=vmem, size = 0x2000, scoped, tag = 'scratch operand']
  #allocation3 [shape = 'f32[1,512]{1,0:T(1,128)}', space=vmem, size = 0x800, scoped, tag = 'scratch operand']
  %s0 = inlined_call_operand.vmem [shape: f32[2,4,8,128], index: 0, kind: input, shape index: {}]
  %s1 = inlined_call_operand.vmem [shape: f32[128,128], index: 1, kind: input, shape index: {}]
  %s2 = inlined_call_operand.vmem [shape: f32[1,128], index: 2, kind: input, shape index: {}]
  %s3 = inlined_call_operand.vmem [shape: f32[1,128], index: 3, kind: input, shape index: {}]
  %s4 = inlined_call_operand.vmem [shape: f32[3,128,256], index: 4, kind: input, shape index: {}]
  %s5 = inlined_call_operand.vmem [shape: f32[1,256], index: 5, kind: input, shape index: {}]
  %s6 = inlined_call_operand.vmem [shape: f32[1,256], index: 6, kind: input, shape index: {}]
  %s7 = inlined_call_operand.vmem [shape: f32[512,128], index: 7, kind: input, shape index: {}]
  %s8 = inlined_call_operand.vmem [shape: f32[1,128], index: 8, kind: input, shape index: {}]
  %s9 = inlined_call_operand.vmem [shape: f32[128,8], index: 9, kind: input, shape index: {}]
  %s10 = inlined_call_operand.vmem [shape: f32[1,8], index: 10, kind: input, shape index: {}]
  %s11 = inlined_call_operand.hbm [shape: f32[2,1,8], index: 11, kind: output, shape index: {}]
  %s12 = sld [smem:[#allocation0]]
  $region77: #{audio_cnn_forward.1} parent=0
    _
  %s14 = ssub.s32 1, %s12
  %s15 = scalar_select 0, %s14, %s12
  $region1: #{audio_cnn_forward.1} parent=0
    #allocation4 [shape = 'u8[1024]{0}', space=vmem, size = 0x400, scoped, tag = 'output window, operand 0']
    #allocation5 [shape = 's32[2]{0}', space=sflag, size = 0x8, scoped, tag = 'scoped memory for audio_cnn_forward.1']
    %16 = vsyncpa [#allocation5], 0
    %s17 = scalar_lea.sflag [#allocation5], 1
    %18 = vsyncpa %s17, 0
    loop: start=0, step=1, limit=4
    $region2: #{audio_cnn_forward.1} parent=1 // loop_pre_header
      _
    $region3: #{audio_cnn_forward.1} parent=1 // loop_header
      %s20 = sphi 0, %s24
      %p21 = scmp.ge.s32.totalorder %s20, 4
      %s30 = sphi 0, %s32
      %s33 = sphi 0, %s30
      %s34 = sphi 0, %s33
      %s50 = sphi 0, %s34
      %s54 = sphi 0, %s54
      %s56 = sphi 0, %s54
      %s57 = sphi 0, %s56
      %s71 = sphi 0, %s57
      %s75 = sphi 0, %s75
      %s77 = sphi 0, %s75
      %s78 = sphi 0, %s77
      %s92 = sphi 0, %s78
      %s96 = sphi 0, %s96
      %s98 = sphi 0, %s96
      %s99 = sphi 0, %s98
      %s113 = sphi 0, %s99
      %s117 = sphi 0, %s117
      %s119 = sphi 0, %s117
      %s120 = sphi 0, %s119
      %s134 = sphi 0, %s120
      %s138 = sphi 0, %s138
      %s140 = sphi 0, %s138
      %s141 = sphi 0, %s140
      %s155 = sphi 0, %s141
      %s159 = sphi 0, %s159
      %s161 = sphi 0, %s159
      %s162 = sphi 0, %s161
      %s176 = sphi 0, %s162
      %s180 = sphi 0, %s180
      %s182 = sphi 0, %s180
      %s183 = sphi 0, %s182
      %s197 = sphi 0, %s183
      %s201 = sphi 0, %s201
      %s203 = sphi 0, %s201
      %s204 = sphi 0, %s203
      %s218 = sphi 0, %s204
      %s222 = sphi 0, %s222
      %s224 = sphi 0, %s222
      %s225 = sphi 0, %s224
      %s239 = sphi 0, %s225
      %s243 = sphi 0, %s243
      %s245 = sphi 0, %s243
      %s246 = sphi 0, %s245
      %s260 = sphi 0, %s246
      %s266 = sphi 0, %s268
      %s269 = sphi 0, %s266
      %s270 = sphi 0, %s269
      %s286 = sphi 0, %s270
    $region4: #{audio_cnn_forward.1} parent=1 // loop_header_branch
      %23 = sbr.rel (%p21) target = $region8
    $region5: #{audio_cnn_forward.1} parent=1 // loop_body
      %s25 = ssub.s32 %s20, 1
      %s26 = ssub.s32 %s20, 2
      %s27 = sadd.s32 %s20, 1
      %s28 = ssub.s32 %s20, %s27
      %p29 = scmp.eq.s32.totalorder %s28, 0
      %s31 = sadd.s32 %s30, 1
      %s32 = scalar_select %p29, %s30, %s31
      %p35 = pneg %p29
      %p36 = scmp.eq.s32.totalorder %s20, 1
      %p37 = por %p35, %p36
      %p38 = scmp.ne.s32.totalorder %s30, %s33
      %p39 = scmp.eq.s32.totalorder %s20, 0
      %p40 = por %p38, %p39
      %p41 = scmp.ne.s32.totalorder %s30, %s33
      %p42 = scmp.eq.s32.totalorder %s25, 1
      %p43 = por %p41, %p42
      %p44 = scmp.ne.s32.totalorder %s33, %s34
      %p45 = scmp.eq.s32.totalorder %s25, 0
      %p46 = por %p44, %p45
      %p47 = scmp.ne.s32.totalorder %s33, %s34
      %p48 = scmp.eq.s32.totalorder %s26, 1
      %p49 = por %p47, %p48
      %p51 = scmp.ne.s32.totalorder %s34, %s50
      %p52 = scmp.eq.s32.totalorder %s26, 0
      %p53 = por %p51, %p52
      %s55 = sadd.s32 %s54, 1
      %p58 = scmp.eq.s32.totalorder %s20, 1
      %p59 = scmp.ne.s32.totalorder %s54, %s56
      %p60 = scmp.eq.s32.totalorder %s20, 0
      %p61 = por %p59, %p60
      %p62 = scmp.ne.s32.totalorder %s54, %s56
      %p63 = scmp.eq.s32.totalorder %s25, 1
      %p64 = por %p62, %p63
      %p65 = scmp.ne.s32.totalorder %s56, %s57
      %p66 = scmp.eq.s32.totalorder %s25, 0
      %p67 = por %p65, %p66
      %p68 = scmp.ne.s32.totalorder %s56, %s57
      %p69 = scmp.eq.s32.totalorder %s26, 1
      %p70 = por %p68, %p69
      %p72 = scmp.ne.s32.totalorder %s57, %s71
      %p73 = scmp.eq.s32.totalorder %s26, 0
      %p74 = por %p72, %p73
      %s76 = sadd.s32 %s75, 1
      %p79 = scmp.eq.s32.totalorder %s20, 1
      %p80 = scmp.ne.s32.totalorder %s75, %s77
      %p81 = scmp.eq.s32.totalorder %s20, 0
      %p82 = por %p80, %p81
      %p83 = scmp.ne.s32.totalorder %s75, %s77
      %p84 = scmp.eq.s32.totalorder %s25, 1
      %p85 = por %p83, %p84
      %p86 = scmp.ne.s32.totalorder %s77, %s78
      %p87 = scmp.eq.s32.totalorder %s25, 0
      %p88 = por %p86, %p87
      %p89 = scmp.ne.s32.totalorder %s77, %s78
      %p90 = scmp.eq.s32.totalorder %s26, 1
      %p91 = por %p89, %p90
      %p93 = scmp.ne.s32.totalorder %s78, %s92
      %p94 = scmp.eq.s32.totalorder %s26, 0
      %p95 = por %p93, %p94
      %s97 = sadd.s32 %s96, 1
      %p100 = scmp.eq.s32.totalorder %s20, 1
      %p101 = scmp.ne.s32.totalorder %s96, %s98
      %p102 = scmp.eq.s32.totalorder %s20, 0
      %p103 = por %p101, %p102
      %p104 = scmp.ne.s32.totalorder %s96, %s98
      %p105 = scmp.eq.s32.totalorder %s25, 1
      %p106 = por %p104, %p105
      %p107 = scmp.ne.s32.totalorder %s98, %s99
      %p108 = scmp.eq.s32.totalorder %s25, 0
      %p109 = por %p107, %p108
      %p110 = scmp.ne.s32.totalorder %s98, %s99
      %p111 = scmp.eq.s32.totalorder %s26, 1
      %p112 = por %p110, %p111
      %p114 = scmp.ne.s32.totalorder %s99, %s113
      %p115 = scmp.eq.s32.totalorder %s26, 0
      %p116 = por %p114, %p115
      %s118 = sadd.s32 %s117, 1
      %p121 = scmp.eq.s32.totalorder %s20, 1
      %p122 = scmp.ne.s32.totalorder %s117, %s119
      %p123 = scmp.eq.s32.totalorder %s20, 0
      %p124 = por %p122, %p123
      %p125 = scmp.ne.s32.totalorder %s117, %s119
      %p126 = scmp.eq.s32.totalorder %s25, 1
      %p127 = por %p125, %p126
      %p128 = scmp.ne.s32.totalorder %s119, %s120
      %p129 = scmp.eq.s32.totalorder %s25, 0
      %p130 = por %p128, %p129
      %p131 = scmp.ne.s32.totalorder %s119, %s120
      %p132 = scmp.eq.s32.totalorder %s26, 1
      %p133 = por %p131, %p132
      %p135 = scmp.ne.s32.totalorder %s120, %s134
      %p136 = scmp.eq.s32.totalorder %s26, 0
      %p137 = por %p135, %p136
      %s139 = sadd.s32 %s138, 1
      %p142 = scmp.eq.s32.totalorder %s20, 1
      %p143 = scmp.ne.s32.totalorder %s138, %s140
      %p144 = scmp.eq.s32.totalorder %s20, 0
      %p145 = por %p143, %p144
      %p146 = scmp.ne.s32.totalorder %s138, %s140
      %p147 = scmp.eq.s32.totalorder %s25, 1
      %p148 = por %p146, %p147
      %p149 = scmp.ne.s32.totalorder %s140, %s141
      %p150 = scmp.eq.s32.totalorder %s25, 0
      %p151 = por %p149, %p150
      %p152 = scmp.ne.s32.totalorder %s140, %s141
      %p153 = scmp.eq.s32.totalorder %s26, 1
      %p154 = por %p152, %p153
      %p156 = scmp.ne.s32.totalorder %s141, %s155
      %p157 = scmp.eq.s32.totalorder %s26, 0
      %p158 = por %p156, %p157
      %s160 = sadd.s32 %s159, 1
      %p163 = scmp.eq.s32.totalorder %s20, 1
      %p164 = scmp.ne.s32.totalorder %s159, %s161
      %p165 = scmp.eq.s32.totalorder %s20, 0
      %p166 = por %p164, %p165
      %p167 = scmp.ne.s32.totalorder %s159, %s161
      %p168 = scmp.eq.s32.totalorder %s25, 1
      %p169 = por %p167, %p168
      %p170 = scmp.ne.s32.totalorder %s161, %s162
      %p171 = scmp.eq.s32.totalorder %s25, 0
      %p172 = por %p170, %p171
      %p173 = scmp.ne.s32.totalorder %s161, %s162
      %p174 = scmp.eq.s32.totalorder %s26, 1
      %p175 = por %p173, %p174
      %p177 = scmp.ne.s32.totalorder %s162, %s176
      %p178 = scmp.eq.s32.totalorder %s26, 0
      %p179 = por %p177, %p178
      %s181 = sadd.s32 %s180, 1
      %p184 = scmp.eq.s32.totalorder %s20, 1
      %p185 = scmp.ne.s32.totalorder %s180, %s182
      %p186 = scmp.eq.s32.totalorder %s20, 0
      %p187 = por %p185, %p186
      %p188 = scmp.ne.s32.totalorder %s180, %s182
      %p189 = scmp.eq.s32.totalorder %s25, 1
      %p190 = por %p188, %p189
      %p191 = scmp.ne.s32.totalorder %s182, %s183
      %p192 = scmp.eq.s32.totalorder %s25, 0
      %p193 = por %p191, %p192
      %p194 = scmp.ne.s32.totalorder %s182, %s183
      %p195 = scmp.eq.s32.totalorder %s26, 1
      %p196 = por %p194, %p195
      %p198 = scmp.ne.s32.totalorder %s183, %s197
      %p199 = scmp.eq.s32.totalorder %s26, 0
      %p200 = por %p198, %p199
      %s202 = sadd.s32 %s201, 1
      %p205 = scmp.eq.s32.totalorder %s20, 1
      %p206 = scmp.ne.s32.totalorder %s201, %s203
      %p207 = scmp.eq.s32.totalorder %s20, 0
      %p208 = por %p206, %p207
      %p209 = scmp.ne.s32.totalorder %s201, %s203
      %p210 = scmp.eq.s32.totalorder %s25, 1
      %p211 = por %p209, %p210
      %p212 = scmp.ne.s32.totalorder %s203, %s204
      %p213 = scmp.eq.s32.totalorder %s25, 0
      %p214 = por %p212, %p213
      %p215 = scmp.ne.s32.totalorder %s203, %s204
      %p216 = scmp.eq.s32.totalorder %s26, 1
      %p217 = por %p215, %p216
      %p219 = scmp.ne.s32.totalorder %s204, %s218
      %p220 = scmp.eq.s32.totalorder %s26, 0
      %p221 = por %p219, %p220
      %s223 = sadd.s32 %s222, 1
      %p226 = scmp.eq.s32.totalorder %s20, 1
      %p227 = scmp.ne.s32.totalorder %s222, %s224
      %p228 = scmp.eq.s32.totalorder %s20, 0
      %p229 = por %p227, %p228
      %p230 = scmp.ne.s32.totalorder %s222, %s224
      %p231 = scmp.eq.s32.totalorder %s25, 1
      %p232 = por %p230, %p231
      %p233 = scmp.ne.s32.totalorder %s224, %s225
      %p234 = scmp.eq.s32.totalorder %s25, 0
      %p235 = por %p233, %p234
      %p236 = scmp.ne.s32.totalorder %s224, %s225
      %p237 = scmp.eq.s32.totalorder %s26, 1
      %p238 = por %p236, %p237
      %p240 = scmp.ne.s32.totalorder %s225, %s239
      %p241 = scmp.eq.s32.totalorder %s26, 0
      %p242 = por %p240, %p241
      %s244 = sadd.s32 %s243, 1
      %p247 = scmp.eq.s32.totalorder %s20, 1
      %p248 = scmp.ne.s32.totalorder %s243, %s245
      %p249 = scmp.eq.s32.totalorder %s20, 0
      %p250 = por %p248, %p249
      %p251 = scmp.ne.s32.totalorder %s243, %s245
      %p252 = scmp.eq.s32.totalorder %s25, 1
      %p253 = por %p251, %p252
      %p254 = scmp.ne.s32.totalorder %s245, %s246
      %p255 = scmp.eq.s32.totalorder %s25, 0
      %p256 = por %p254, %p255
      %p257 = scmp.ne.s32.totalorder %s245, %s246
      %p258 = scmp.eq.s32.totalorder %s26, 1
      %p259 = por %p257, %p258
      %p261 = scmp.ne.s32.totalorder %s246, %s260
      %p262 = scmp.eq.s32.totalorder %s26, 0
      %p263 = por %p261, %p262
      %s264 = ssub.s32 %s20, %s27
      %p265 = scmp.eq.s32.totalorder %s264, 0
      %s267 = sadd.s32 %s266, 1
      %s268 = scalar_select %p265, %s266, %s267
      %p271 = pneg %p265
      %p272 = scmp.eq.s32.totalorder %s20, 1
      %p273 = por %p271, %p272
      %p274 = scmp.ne.s32.totalorder %s266, %s269
      %p275 = scmp.eq.s32.totalorder %s20, 0
      %p276 = por %p274, %p275
      %p277 = scmp.ne.s32.totalorder %s266, %s269
      %p278 = scmp.eq.s32.totalorder %s25, 1
      %p279 = por %p277, %p278
      %p280 = scmp.ne.s32.totalorder %s269, %s270
      %p281 = scmp.eq.s32.totalorder %s25, 0
      %p282 = por %p280, %p281
      %p283 = scmp.ne.s32.totalorder %s269, %s270
      %p284 = scmp.eq.s32.totalorder %s26, 1
      %p285 = por %p283, %p284
      %p287 = scmp.ne.s32.totalorder %s270, %s286
      %p288 = scmp.eq.s32.totalorder %s26, 0
      %p289 = por %p287, %p288
      %p290 = scmp.le.s32.totalorder 1, %s20
      %p291 = scmp.lt.s32.totalorder %s20, 3
      %p292 = pnand %p290, %p291
      %p293 = pneg %p292
      // Predicated region
      $region9: #{audio_cnn_forward.1} parent=5 // pred_check
        _
      $region10: #{audio_cnn_forward.1} parent=5 // pred_check_branch
        %295 = sbr.rel (%p292) target = $region12
      $region11: #{audio_cnn_forward.1} parent=5 // pred_region
        %s296 = ssub.s32 %s20, 1
        // Predicated region
        $region13: #{audio_cnn_forward.1} parent=11 // pred_check
          %p297 = pneg %p67
        $region14: #{audio_cnn_forward.1} parent=11 // pred_check_branch
          %299 = sbr.rel (%p297) target = $region16
        $region15: #{audio_cnn_forward.1} parent=11 // pred_region
          _
        $region16: #{audio_cnn_forward.1} parent=11 // pred_fallthru
          _
        // Predicated region
        $region17: #{audio_cnn_forward.1} parent=11 // pred_check
          %p300 = pneg %p88
        $region18: #{audio_cnn_forward.1} parent=11 // pred_check_branch
          %302 = sbr.rel (%p300) target = $region20
        $region19: #{audio_cnn_forward.1} parent=11 // pred_region
          _
        $region20: #{audio_cnn_forward.1} parent=11 // pred_fallthru
          _
        // Predicated region
        $region21: #{audio_cnn_forward.1} parent=11 // pred_check
          %p303 = pneg %p109
        $region22: #{audio_cnn_forward.1} parent=11 // pred_check_branch
          %305 = sbr.rel (%p303) target = $region24
        $region23: #{audio_cnn_forward.1} parent=11 // pred_region
          _
        $region24: #{audio_cnn_forward.1} parent=11 // pred_fallthru
          _
        // Predicated region
        $region25: #{audio_cnn_forward.1} parent=11 // pred_check
          %p306 = pneg %p130
        $region26: #{audio_cnn_forward.1} parent=11 // pred_check_branch
          %308 = sbr.rel (%p306) target = $region28
        $region27: #{audio_cnn_forward.1} parent=11 // pred_region
          _
        $region28: #{audio_cnn_forward.1} parent=11 // pred_fallthru
          _
        // Predicated region
        $region29: #{audio_cnn_forward.1} parent=11 // pred_check
          %p309 = pneg %p151
        $region30: #{audio_cnn_forward.1} parent=11 // pred_check_branch
          %311 = sbr.rel (%p309) target = $region32
        $region31: #{audio_cnn_forward.1} parent=11 // pred_region
          _
        $region32: #{audio_cnn_forward.1} parent=11 // pred_fallthru
          _
        // Predicated region
        $region33: #{audio_cnn_forward.1} parent=11 // pred_check
          %p312 = pneg %p172
        $region34: #{audio_cnn_forward.1} parent=11 // pred_check_branch
          %314 = sbr.rel (%p312) target = $region36
        $region35: #{audio_cnn_forward.1} parent=11 // pred_region
          _
        $region36: #{audio_cnn_forward.1} parent=11 // pred_fallthru
          _
        // Predicated region
        $region37: #{audio_cnn_forward.1} parent=11 // pred_check
          %p315 = pneg %p193
        $region38: #{audio_cnn_forward.1} parent=11 // pred_check_branch
          %317 = sbr.rel (%p315) target = $region40
        $region39: #{audio_cnn_forward.1} parent=11 // pred_region
          _
        $region40: #{audio_cnn_forward.1} parent=11 // pred_fallthru
          _
        // Predicated region
        $region41: #{audio_cnn_forward.1} parent=11 // pred_check
          %p318 = pneg %p214
        $region42: #{audio_cnn_forward.1} parent=11 // pred_check_branch
          %320 = sbr.rel (%p318) target = $region44
        $region43: #{audio_cnn_forward.1} parent=11 // pred_region
          _
        $region44: #{audio_cnn_forward.1} parent=11 // pred_fallthru
          _
        // Predicated region
        $region45: #{audio_cnn_forward.1} parent=11 // pred_check
          %p321 = pneg %p235
        $region46: #{audio_cnn_forward.1} parent=11 // pred_check_branch
          %323 = sbr.rel (%p321) target = $region48
        $region47: #{audio_cnn_forward.1} parent=11 // pred_region
          _
        $region48: #{audio_cnn_forward.1} parent=11 // pred_fallthru
          _
        // Predicated region
        $region49: #{audio_cnn_forward.1} parent=11 // pred_check
          %p324 = pneg %p256
        $region50: #{audio_cnn_forward.1} parent=11 // pred_check_branch
          %326 = sbr.rel (%p324) target = $region52
        $region51: #{audio_cnn_forward.1} parent=11 // pred_region
          _
        $region52: #{audio_cnn_forward.1} parent=11 // pred_fallthru
          _
      $region12: #{audio_cnn_forward.1} parent=5 // pred_fallthru
        _
      %p327 = scmp.lt.s32.totalorder %s20, 2
      // Predicated region
      $region53: #{audio_cnn_forward.1} parent=5 // pred_check
        %p328 = pneg %p327
      $region54: #{audio_cnn_forward.1} parent=5 // pred_check_branch
        %330 = sbr.rel (%p328) target = $region56
      $region55: #{audio_cnn_forward.1} parent=5 // pred_region
        // Predicated region
        $region57: #{audio_cnn_forward.1} parent=55 // pred_check
          %p331 = pneg %p40
        $region58: #{audio_cnn_forward.1} parent=55 // pred_check_branch
          %333 = sbr.rel (%p331) target = $region60
        $region59: #{audio_cnn_forward.1} parent=55 // pred_region
          %p334 = scmp.lt.s32.totalorder %s20, 1
          %s335 = scalar_select %p334, %s20, 1
          %s336 = smul.addr %s335, 4
          %s337 = smul.addr %s336, 8
          %s338 = scalar_lea.vmem %s0, %s337
        $region60: #{audio_cnn_forward.1} parent=55 // pred_fallthru
          _
      $region56: #{audio_cnn_forward.1} parent=5 // pred_fallthru
        _
      %p339 = scmp.le.s32.totalorder 1, %s20
      %p340 = scmp.lt.s32.totalorder %s20, 3
      %p341 = pnand %p339, %p340
      %p342 = pneg %p341
      // Predicated region
      $region61: #{audio_cnn_forward.1} parent=5 // pred_check
        _
      $region62: #{audio_cnn_forward.1} parent=5 // pred_check_branch
        %344 = sbr.rel (%p341) target = $region64
      $region63: #{audio_cnn_forward.1} parent=5 // pred_region
        %s345 = ssub.s32 %s20, 1
        %p346 = scmp.lt.s32.totalorder %s25, 1
        %s347 = scalar_select %p346, %s25, 1
        %s348 = smul.addr %s347, 4
        %s349 = smul.addr %s348, 8
        %s350 = scalar_lea.vmem %s0, %s349
        %p351 = pneg %p46
        %p352 = pneg %p43
        %p353 = pneg %p67
        %p354 = pneg %p64
        %p355 = pneg %p88
        %p356 = pneg %p85
        %p357 = pneg %p109
        %p358 = pneg %p106
        %p359 = pneg %p130
        %p360 = pneg %p127
        %p361 = pneg %p151
        %p362 = pneg %p148
        %p363 = pneg %p172
        %p364 = pneg %p169
        %p365 = pneg %p193
        %p366 = pneg %p190
        %p367 = pneg %p214
        %p368 = pneg %p211
        %p369 = pneg %p235
        %p370 = pneg %p232
        %p371 = pneg %p256
        %p372 = pneg %p253
        %p373 = pneg %p282
        %p374 = pneg %p279
        %s375 = sand.u32 %s269, 1
        %s376 = scalar_lea.sflag [#allocation5], %s375
        %s377 = sand.u32 %s269, 1
        %s378 = scalar_lea.vmem [#allocation4], %s377
        %p379 = scmp.lt.s32.totalorder %s25, 1
        %s380 = scalar_select %p379, %s25, 1
        %s381 = smul.addr %s380, 4
        %s382 = smul.addr %s381, 8
        %s383 = scalar_lea.vmem %s0, %s382
        %v384 = vld [vmem:[%s383] sm:$0xff]
        %v385 = vld [vmem:[%s1] sm:$0xff]
        %v386 = vld [vmem:[%s1 + $0x8] sm:$0xff]
        %v387 = vld [vmem:[%s1 + $0x10] sm:$0xff]
        %v388 = vld [vmem:[%s1 + $0x18] sm:$0xff]
        %v389 = vld [vmem:[%s1 + $0x20] sm:$0xff]
        %v390 = vld [vmem:[%s1 + $0x28] sm:$0xff]
        %v391 = vld [vmem:[%s1 + $0x30] sm:$0xff]
        %v392 = vld [vmem:[%s1 + $0x38] sm:$0xff]
        %v393 = vld [vmem:[%s1 + $0x40] sm:$0xff]
        %v394 = vld [vmem:[%s1 + $0x48] sm:$0xff]
        %v395 = vld [vmem:[%s1 + $0x50] sm:$0xff]
        %v396 = vld [vmem:[%s1 + $0x58] sm:$0xff]
        %v397 = vld [vmem:[%s1 + $0x60] sm:$0xff]
        %v398 = vld [vmem:[%s1 + $0x68] sm:$0xff]
        %v399 = vld [vmem:[%s1 + $0x70] sm:$0xff]
        %v400 = vld [vmem:[%s1 + $0x78] sm:$0xff]
        %401 = vmatprep.subr.mxu0 0.0
        %402 = vmatpush1.msra.mxu0 %v400
        %403 = vmatprep.subr.mxu0 0.0
        %404 = vmatpush1.msra.mxu0 %v399
        %405 = vmatprep.subr.mxu0 0.0
        %406 = vmatpush1.msra.mxu0 %v398
        %407 = vmatprep.subr.mxu0 0.0
        %408 = vmatpush1.msra.mxu0 %v397
        %409 = vmatprep.subr.mxu0 0.0
        %410 = vmatpush1.msra.mxu0 %v396
        %411 = vmatprep.subr.mxu0 0.0
        %412 = vmatpush1.msra.mxu0 %v395
        %413 = vmatprep.subr.mxu0 0.0
        %414 = vmatpush1.msra.mxu0 %v394
        %415 = vmatprep.subr.mxu0 0.0
        %416 = vmatpush1.msra.mxu0 %v393
        %417 = vmatprep.subr.mxu0 0.0
        %418 = vmatpush1.msra.mxu0 %v392
        %419 = vmatprep.subr.mxu0 0.0
        %420 = vmatpush1.msra.mxu0 %v391
        %421 = vmatprep.subr.mxu0 0.0
        %422 = vmatpush1.msra.mxu0 %v390
        %423 = vmatprep.subr.mxu0 0.0
        %424 = vmatpush1.msra.mxu0 %v389
        %425 = vmatprep.subr.mxu0 0.0
        %426 = vmatpush1.msra.mxu0 %v388
        %427 = vmatprep.subr.mxu0 0.0
        %428 = vmatpush1.msra.mxu0 %v387
        %429 = vmatprep.subr.mxu0 0.0
        %430 = vmatpush1.msra.mxu0 %v386
        %431 = vmatprep.subr.mxu0 0.0
        %432 = vmatpush1.msra.mxu0 %v385
        %433 = vmatprep.subr.mxu0 0.0
        %434 = vmatpush2.msra.mxu0 0.0
        %435 = vmatprep.subr.mxu0 0.0
        %436 = vmatpush2.msra.mxu0 0.0
        %437 = vmatprep.subr.mxu0 0.0
        %438 = vmatpush2.msra.mxu0 0.0
        %439 = vmatprep.subr.mxu0 0.0
        %440 = vmatpush2.msra.mxu0 0.0
        %441 = vmatprep.subr.mxu0 0.0
        %442 = vmatpush2.msra.mxu0 0.0
        %443 = vmatprep.subr.mxu0 0.0
        %444 = vmatpush2.msra.mxu0 0.0
        %445 = vmatprep.subr.mxu0 0.0
        %446 = vmatpush2.msra.mxu0 0.0
        %447 = vmatprep.subr.mxu0 0.0
        %448 = vmatpush2.msra.mxu0 0.0
        %449 = vmatprep.subr.mxu0 0.0
        %450 = vmatpush2.msra.mxu0 0.0
        %451 = vmatprep.subr.mxu0 0.0
        %452 = vmatpush2.msra.mxu0 0.0
        %453 = vmatprep.subr.mxu0 0.0
        %454 = vmatpush2.msra.mxu0 0.0
        %455 = vmatprep.subr.mxu0 0.0
        %456 = vmatpush2.msra.mxu0 0.0
        %457 = vmatprep.subr.mxu0 0.0
        %458 = vmatpush2.msra.mxu0 0.0
        %459 = vmatprep.subr.mxu0 0.0
        %460 = vmatpush2.msra.mxu0 0.0
        %461 = vmatprep.subr.mxu0 0.0
        %462 = vmatpush2.msra.mxu0 0.0
        %463 = vmatprep.subr.mxu0 0.0
        %464 = vmatpush2.msra.mxu0 0.0
        %465 = vmatprep.mubr.f32.mxu0 0.0
        %466 = vmatmul.mubr.f32.gmra.mxu0 %v384
        %v467 = vpop.f32.mrf.mxu0
        %v468 = vadd.f32 0.0, %v467
        %v469 = vpop.f32.mrf.mxu0
        %470 = vdwg.mxu0
        %v471 = vld [vmem:[%s2] sm:$0x1]
        %v473 = vlaneseq
        %v474 = vshrl.u32 %v473, 7
        %v475 = vsub.s32 0, %v474
        %v476 = vrot.slane %v471, %v475
        %v478 = vmul.f32 %v468, %v476
        %v479 = vld [vmem:[%s3] sm:$0x1]
        %v481 = vlaneseq
        %v482 = vshrl.u32 %v481, 7
        %v483 = vsub.s32 0, %v482
        %v484 = vrot.slane %v479, %v483
        %v486 = vadd.f32 %v478, %v484
        %v487 = vmax.f32 %v486, 0.0
        %s488 = scalar_lea.vmem %s383, 8
        %v489 = vld [vmem:[%s488] sm:$0xff]
        %490 = vmatprep.subr.mxu0 0.0
        %491 = vmatpush1.msra.mxu0 %v400
        %492 = vmatprep.subr.mxu0 0.0
        %493 = vmatpush1.msra.mxu0 %v399
        %494 = vmatprep.subr.mxu0 0.0
        %495 = vmatpush1.msra.mxu0 %v398
        %496 = vmatprep.subr.mxu0 0.0
        %497 = vmatpush1.msra.mxu0 %v397
        %498 = vmatprep.subr.mxu0 0.0
        %499 = vmatpush1.msra.mxu0 %v396
        %500 = vmatprep.subr.mxu0 0.0
        %501 = vmatpush1.msra.mxu0 %v395
        %502 = vmatprep.subr.mxu0 0.0
        %503 = vmatpush1.msra.mxu0 %v394
        %504 = vmatprep.subr.mxu0 0.0
        %505 = vmatpush1.msra.mxu0 %v393
        %506 = vmatprep.subr.mxu0 0.0
        %507 = vmatpush1.msra.mxu0 %v392
        %508 = vmatprep.subr.mxu0 0.0
        %509 = vmatpush1.msra.mxu0 %v391
        %510 = vmatprep.subr.mxu0 0.0
        %511 = vmatpush1.msra.mxu0 %v390
        %512 = vmatprep.subr.mxu0 0.0
        %513 = vmatpush1.msra.mxu0 %v389
        %514 = vmatprep.subr.mxu0 0.0
        %515 = vmatpush1.msra.mxu0 %v388
        %516 = vmatprep.subr.mxu0 0.0
        %517 = vmatpush1.msra.mxu0 %v387
        %518 = vmatprep.subr.mxu0 0.0
        %519 = vmatpush1.msra.mxu0 %v386
        %520 = vmatprep.subr.mxu0 0.0
        %521 = vmatpush1.msra.mxu0 %v385
        %522 = vmatprep.subr.mxu0 0.0
        %523 = vmatpush2.msra.mxu0 0.0
        %524 = vmatprep.subr.mxu0 0.0
        %525 = vmatpush2.msra.mxu0 0.0
        %526 = vmatprep.subr.mxu0 0.0
        %527 = vmatpush2.msra.mxu0 0.0
        %528 = vmatprep.subr.mxu0 0.0
        %529 = vmatpush2.msra.mxu0 0.0
        %530 = vmatprep.subr.mxu0 0.0
        %531 = vmatpush2.msra.mxu0 0.0
        %532 = vmatprep.subr.mxu0 0.0
        %533 = vmatpush2.msra.mxu0 0.0
        %534 = vmatprep.subr.mxu0 0.0
        %535 = vmatpush2.msra.mxu0 0.0
        %536 = vmatprep.subr.mxu0 0.0
        %537 = vmatpush2.msra.mxu0 0.0
        %538 = vmatprep.subr.mxu0 0.0
        %539 = vmatpush2.msra.mxu0 0.0
        %540 = vmatprep.subr.mxu0 0.0
        %541 = vmatpush2.msra.mxu0 0.0
        %542 = vmatprep.subr.mxu0 0.0
        %543 = vmatpush2.msra.mxu0 0.0
        %544 = vmatprep.subr.mxu0 0.0
        %545 = vmatpush2.msra.mxu0 0.0
        %546 = vmatprep.subr.mxu0 0.0
        %547 = vmatpush2.msra.mxu0 0.0
        %548 = vmatprep.subr.mxu0 0.0
        %549 = vmatpush2.msra.mxu0 0.0
        %550 = vmatprep.subr.mxu0 0.0
        %551 = vmatpush2.msra.mxu0 0.0
        %552 = vmatprep.subr.mxu0 0.0
        %553 = vmatpush2.msra.mxu0 0.0
        %554 = vmatprep.mubr.f32.mxu0 0.0
        %555 = vmatmul.mubr.f32.gmra.mxu0 %v489
        %v556 = vpop.f32.mrf.mxu0
        %v557 = vadd.f32 0.0, %v556
        %v558 = vpop.f32.mrf.mxu0
        %559 = vdwg.mxu0
        %v560 = vmul.f32 %v557, %v476
        %v561 = vadd.f32 %v560, %v484
        %v562 = vmax.f32 %v561, 0.0
        %v563 = vmax.f32 %v487, %v562
        %s564 = scalar_lea.vmem %s383, 16
        %v565 = vld [vmem:[%s564] sm:$0xff]
        %566 = vmatprep.subr.mxu0 0.0
        %567 = vmatpush1.msra.mxu0 %v400
        %568 = vmatprep.subr.mxu0 0.0
        %569 = vmatpush1.msra.mxu0 %v399
        %570 = vmatprep.subr.mxu0 0.0
        %571 = vmatpush1.msra.mxu0 %v398
        %572 = vmatprep.subr.mxu0 0.0
        %573 = vmatpush1.msra.mxu0 %v397
        %574 = vmatprep.subr.mxu0 0.0
        %575 = vmatpush1.msra.mxu0 %v396
        %576 = vmatprep.subr.mxu0 0.0
        %577 = vmatpush1.msra.mxu0 %v395
        %578 = vmatprep.subr.mxu0 0.0
        %579 = vmatpush1.msra.mxu0 %v394
        %580 = vmatprep.subr.mxu0 0.0
        %581 = vmatpush1.msra.mxu0 %v393
        %582 = vmatprep.subr.mxu0 0.0
        %583 = vmatpush1.msra.mxu0 %v392
        %584 = vmatprep.subr.mxu0 0.0
        %585 = vmatpush1.msra.mxu0 %v391
        %586 = vmatprep.subr.mxu0 0.0
        %587 = vmatpush1.msra.mxu0 %v390
        %588 = vmatprep.subr.mxu0 0.0
        %589 = vmatpush1.msra.mxu0 %v389
        %590 = vmatprep.subr.mxu0 0.0
        %591 = vmatpush1.msra.mxu0 %v388
        %592 = vmatprep.subr.mxu0 0.0
        %593 = vmatpush1.msra.mxu0 %v387
        %594 = vmatprep.subr.mxu0 0.0
        %595 = vmatpush1.msra.mxu0 %v386
        %596 = vmatprep.subr.mxu0 0.0
        %597 = vmatpush1.msra.mxu0 %v385
        %598 = vmatprep.subr.mxu0 0.0
        %599 = vmatpush2.msra.mxu0 0.0
        %600 = vmatprep.subr.mxu0 0.0
        %601 = vmatpush2.msra.mxu0 0.0
        %602 = vmatprep.subr.mxu0 0.0
        %603 = vmatpush2.msra.mxu0 0.0
        %604 = vmatprep.subr.mxu0 0.0
        %605 = vmatpush2.msra.mxu0 0.0
        %606 = vmatprep.subr.mxu0 0.0
        %607 = vmatpush2.msra.mxu0 0.0
        %608 = vmatprep.subr.mxu0 0.0
        %609 = vmatpush2.msra.mxu0 0.0
        %610 = vmatprep.subr.mxu0 0.0
        %611 = vmatpush2.msra.mxu0 0.0
        %612 = vmatprep.subr.mxu0 0.0
        %613 = vmatpush2.msra.mxu0 0.0
        %614 = vmatprep.subr.mxu0 0.0
        %615 = vmatpush2.msra.mxu0 0.0
        %616 = vmatprep.subr.mxu0 0.0
        %617 = vmatpush2.msra.mxu0 0.0
        %618 = vmatprep.subr.mxu0 0.0
        %619 = vmatpush2.msra.mxu0 0.0
        %620 = vmatprep.subr.mxu0 0.0
        %621 = vmatpush2.msra.mxu0 0.0
        %622 = vmatprep.subr.mxu0 0.0
        %623 = vmatpush2.msra.mxu0 0.0
        %624 = vmatprep.subr.mxu0 0.0
        %625 = vmatpush2.msra.mxu0 0.0
        %626 = vmatprep.subr.mxu0 0.0
        %627 = vmatpush2.msra.mxu0 0.0
        %628 = vmatprep.subr.mxu0 0.0
        %629 = vmatpush2.msra.mxu0 0.0
        %630 = vmatprep.mubr.f32.mxu0 0.0
        %631 = vmatmul.mubr.f32.gmra.mxu0 %v565
        %v632 = vpop.f32.mrf.mxu0
        %v633 = vadd.f32 0.0, %v632
        %v634 = vpop.f32.mrf.mxu0
        %635 = vdwg.mxu0
        %v636 = vmul.f32 %v633, %v476
        %v637 = vadd.f32 %v636, %v484
        %v638 = vmax.f32 %v637, 0.0
        %v639 = vmax.f32 %v563, %v638
        %s640 = scalar_lea.vmem %s383, 24
        %v641 = vld [vmem:[%s640] sm:$0xff]
        %642 = vmatprep.subr.mxu0 0.0
        %643 = vmatpush1.msra.mxu0 %v400
        %644 = vmatprep.subr.mxu0 0.0
        %645 = vmatpush1.msra.mxu0 %v399
        %646 = vmatprep.subr.mxu0 0.0
        %647 = vmatpush1.msra.mxu0 %v398
        %648 = vmatprep.subr.mxu0 0.0
        %649 = vmatpush1.msra.mxu0 %v397
        %650 = vmatprep.subr.mxu0 0.0
        %651 = vmatpush1.msra.mxu0 %v396
        %652 = vmatprep.subr.mxu0 0.0
        %653 = vmatpush1.msra.mxu0 %v395
        %654 = vmatprep.subr.mxu0 0.0
        %655 = vmatpush1.msra.mxu0 %v394
        %656 = vmatprep.subr.mxu0 0.0
        %657 = vmatpush1.msra.mxu0 %v393
        %658 = vmatprep.subr.mxu0 0.0
        %659 = vmatpush1.msra.mxu0 %v392
        %660 = vmatprep.subr.mxu0 0.0
        %661 = vmatpush1.msra.mxu0 %v391
        %662 = vmatprep.subr.mxu0 0.0
        %663 = vmatpush1.msra.mxu0 %v390
        %664 = vmatprep.subr.mxu0 0.0
        %665 = vmatpush1.msra.mxu0 %v389
        %666 = vmatprep.subr.mxu0 0.0
        %667 = vmatpush1.msra.mxu0 %v388
        %668 = vmatprep.subr.mxu0 0.0
        %669 = vmatpush1.msra.mxu0 %v387
        %670 = vmatprep.subr.mxu0 0.0
        %671 = vmatpush1.msra.mxu0 %v386
        %672 = vmatprep.subr.mxu0 0.0
        %673 = vmatpush1.msra.mxu0 %v385
        %674 = vmatprep.subr.mxu0 0.0
        %675 = vmatpush2.msra.mxu0 0.0
        %676 = vmatprep.subr.mxu0 0.0
        %677 = vmatpush2.msra.mxu0 0.0
        %678 = vmatprep.subr.mxu0 0.0
        %679 = vmatpush2.msra.mxu0 0.0
        %680 = vmatprep.subr.mxu0 0.0
        %681 = vmatpush2.msra.mxu0 0.0
        %682 = vmatprep.subr.mxu0 0.0
        %683 = vmatpush2.msra.mxu0 0.0
        %684 = vmatprep.subr.mxu0 0.0
        %685 = vmatpush2.msra.mxu0 0.0
        %686 = vmatprep.subr.mxu0 0.0
        %687 = vmatpush2.msra.mxu0 0.0
        %688 = vmatprep.subr.mxu0 0.0
        %689 = vmatpush2.msra.mxu0 0.0
        %690 = vmatprep.subr.mxu0 0.0
        %691 = vmatpush2.msra.mxu0 0.0
        %692 = vmatprep.subr.mxu0 0.0
        %693 = vmatpush2.msra.mxu0 0.0
        %694 = vmatprep.subr.mxu0 0.0
        %695 = vmatpush2.msra.mxu0 0.0
        %696 = vmatprep.subr.mxu0 0.0
        %697 = vmatpush2.msra.mxu0 0.0
        %698 = vmatprep.subr.mxu0 0.0
        %699 = vmatpush2.msra.mxu0 0.0
        %700 = vmatprep.subr.mxu0 0.0
        %701 = vmatpush2.msra.mxu0 0.0
        %702 = vmatprep.subr.mxu0 0.0
        %703 = vmatpush2.msra.mxu0 0.0
        %704 = vmatprep.subr.mxu0 0.0
        %705 = vmatpush2.msra.mxu0 0.0
        %706 = vmatprep.mubr.f32.mxu0 0.0
        %707 = vmatmul.mubr.f32.gmra.mxu0 %v641
        %v708 = vpop.f32.mrf.mxu0
        %v709 = vadd.f32 0.0, %v708
        %v710 = vpop.f32.mrf.mxu0
        %711 = vdwg.mxu0
        %v712 = vmul.f32 %v709, %v476
        %v713 = vadd.f32 %v712, %v484
        %v714 = vmax.f32 %v713, 0.0
        %v715 = vmax.f32 %v639, %v714
        %716 = vst [vmem:[#allocation2] sm:$0xff] 0.0
        %717 = vst [vmem:[#allocation2 + $0x8] sm:$0x3] 0.0
        %718 = vst [vmem:[#allocation2 + $0x1] sm:$0xff] %v715
        %v719 = vld [vmem:[#allocation2] sm:$0xff]
        %v720 = vld [vmem:[%s4] sm:$0xff]
        %v721 = vld [vmem:[%s4 + $0x8] sm:$0xff]
        %v722 = vld [vmem:[%s4 + $0x10] sm:$0xff]
        %v723 = vld [vmem:[%s4 + $0x18] sm:$0xff]
        %v724 = vld [vmem:[%s4 + $0x20] sm:$0xff]
        %v725 = vld [vmem:[%s4 + $0x28] sm:$0xff]
        %v726 = vld [vmem:[%s4 + $0x30] sm:$0xff]
        %v727 = vld [vmem:[%s4 + $0x38] sm:$0xff]
        %v728 = vld [vmem:[%s4 + $0x40] sm:$0xff]
        %v729 = vld [vmem:[%s4 + $0x48] sm:$0xff]
        %v730 = vld [vmem:[%s4 + $0x50] sm:$0xff]
        %v731 = vld [vmem:[%s4 + $0x58] sm:$0xff]
        %v732 = vld [vmem:[%s4 + $0x60] sm:$0xff]
        %v733 = vld [vmem:[%s4 + $0x68] sm:$0xff]
        %v734 = vld [vmem:[%s4 + $0x70] sm:$0xff]
        %v735 = vld [vmem:[%s4 + $0x78] sm:$0xff]
        %v736 = vld [vmem:[%s4 + $0x80] sm:$0xff]
        %v737 = vld [vmem:[%s4 + $0x88] sm:$0xff]
        %v738 = vld [vmem:[%s4 + $0x90] sm:$0xff]
        %v739 = vld [vmem:[%s4 + $0x98] sm:$0xff]
        %v740 = vld [vmem:[%s4 + $0xa0] sm:$0xff]
        %v741 = vld [vmem:[%s4 + $0xa8] sm:$0xff]
        %v742 = vld [vmem:[%s4 + $0xb0] sm:$0xff]
        %v743 = vld [vmem:[%s4 + $0xb8] sm:$0xff]
        %v744 = vld [vmem:[%s4 + $0xc0] sm:$0xff]
        %v745 = vld [vmem:[%s4 + $0xc8] sm:$0xff]
        %v746 = vld [vmem:[%s4 + $0xd0] sm:$0xff]
        %v747 = vld [vmem:[%s4 + $0xd8] sm:$0xff]
        %v748 = vld [vmem:[%s4 + $0xe0] sm:$0xff]
        %v749 = vld [vmem:[%s4 + $0xe8] sm:$0xff]
        %v750 = vld [vmem:[%s4 + $0xf0] sm:$0xff]
        %v751 = vld [vmem:[%s4 + $0xf8] sm:$0xff]
        %v752 = vld [vmem:[#allocation2 + $0x1] sm:$0xff]
        %s753 = scalar_lea.vmem %s4, 256
        %v754 = vld [vmem:[%s753] sm:$0xff]
        %v755 = vld [vmem:[%s753 + $0x8] sm:$0xff]
        %v756 = vld [vmem:[%s753 + $0x10] sm:$0xff]
        %v757 = vld [vmem:[%s753 + $0x18] sm:$0xff]
        %v758 = vld [vmem:[%s753 + $0x20] sm:$0xff]
        %v759 = vld [vmem:[%s753 + $0x28] sm:$0xff]
        %v760 = vld [vmem:[%s753 + $0x30] sm:$0xff]
        %v761 = vld [vmem:[%s753 + $0x38] sm:$0xff]
        %v762 = vld [vmem:[%s753 + $0x40] sm:$0xff]
        %v763 = vld [vmem:[%s753 + $0x48] sm:$0xff]
        %v764 = vld [vmem:[%s753 + $0x50] sm:$0xff]
        %v765 = vld [vmem:[%s753 + $0x58] sm:$0xff]
        %v766 = vld [vmem:[%s753 + $0x60] sm:$0xff]
        %v767 = vld [vmem:[%s753 + $0x68] sm:$0xff]
        %v768 = vld [vmem:[%s753 + $0x70] sm:$0xff]
        %v769 = vld [vmem:[%s753 + $0x78] sm:$0xff]
        %v770 = vld [vmem:[%s753 + $0x80] sm:$0xff]
        %v771 = vld [vmem:[%s753 + $0x88] sm:$0xff]
        %v772 = vld [vmem:[%s753 + $0x90] sm:$0xff]
        %v773 = vld [vmem:[%s753 + $0x98] sm:$0xff]
        %v774 = vld [vmem:[%s753 + $0xa0] sm:$0xff]
        %v775 = vld [vmem:[%s753 + $0xa8] sm:$0xff]
        %v776 = vld [vmem:[%s753 + $0xb0] sm:$0xff]
        %v777 = vld [vmem:[%s753 + $0xb8] sm:$0xff]
        %v778 = vld [vmem:[%s753 + $0xc0] sm:$0xff]
        %v779 = vld [vmem:[%s753 + $0xc8] sm:$0xff]
        %v780 = vld [vmem:[%s753 + $0xd0] sm:$0xff]
        %v781 = vld [vmem:[%s753 + $0xd8] sm:$0xff]
        %v782 = vld [vmem:[%s753 + $0xe0] sm:$0xff]
        %v783 = vld [vmem:[%s753 + $0xe8] sm:$0xff]
        %v784 = vld [vmem:[%s753 + $0xf0] sm:$0xff]
        %v785 = vld [vmem:[%s753 + $0xf8] sm:$0xff]
        %786 = vmatprep.subr.mxu0 %v785
        %787 = vmatpush1.msra.mxu0 %v784
        %788 = vmatprep.subr.mxu0 %v783
        %789 = vmatpush1.msra.mxu0 %v782
        %790 = vmatprep.subr.mxu0 %v781
        %791 = vmatpush1.msra.mxu0 %v780
        %792 = vmatprep.subr.mxu0 %v779
        %793 = vmatpush1.msra.mxu0 %v778
        %794 = vmatprep.subr.mxu0 %v777
        %795 = vmatpush1.msra.mxu0 %v776
        %796 = vmatprep.subr.mxu0 %v775
        %797 = vmatpush1.msra.mxu0 %v774
        %798 = vmatprep.subr.mxu0 %v773
        %799 = vmatpush1.msra.mxu0 %v772
        %800 = vmatprep.subr.mxu0 %v771
        %801 = vmatpush1.msra.mxu0 %v770
        %802 = vmatprep.subr.mxu0 %v769
        %803 = vmatpush1.msra.mxu0 %v768
        %804 = vmatprep.subr.mxu0 %v767
        %805 = vmatpush1.msra.mxu0 %v766
        %806 = vmatprep.subr.mxu0 %v765
        %807 = vmatpush1.msra.mxu0 %v764
        %808 = vmatprep.subr.mxu0 %v763
        %809 = vmatpush1.msra.mxu0 %v762
        %810 = vmatprep.subr.mxu0 %v761
        %811 = vmatpush1.msra.mxu0 %v760
        %812 = vmatprep.subr.mxu0 %v759
        %813 = vmatpush1.msra.mxu0 %v758
        %814 = vmatprep.subr.mxu0 %v757
        %815 = vmatpush1.msra.mxu0 %v756
        %816 = vmatprep.subr.mxu0 %v755
        %817 = vmatpush1.msra.mxu0 %v754
        %818 = vmatprep.subr.mxu0 0.0
        %819 = vmatpush2.msra.mxu0 0.0
        %820 = vmatprep.subr.mxu0 0.0
        %821 = vmatpush2.msra.mxu0 0.0
        %822 = vmatprep.subr.mxu0 0.0
        %823 = vmatpush2.msra.mxu0 0.0
        %824 = vmatprep.subr.mxu0 0.0
        %825 = vmatpush2.msra.mxu0 0.0
        %826 = vmatprep.subr.mxu0 0.0
        %827 = vmatpush2.msra.mxu0 0.0
        %828 = vmatprep.subr.mxu0 0.0
        %829 = vmatpush2.msra.mxu0 0.0
        %830 = vmatprep.subr.mxu0 0.0
        %831 = vmatpush2.msra.mxu0 0.0
        %832 = vmatprep.subr.mxu0 0.0
        %833 = vmatpush2.msra.mxu0 0.0
        %834 = vmatprep.subr.mxu0 0.0
        %835 = vmatpush2.msra.mxu0 0.0
        %836 = vmatprep.subr.mxu0 0.0
        %837 = vmatpush2.msra.mxu0 0.0
        %838 = vmatprep.subr.mxu0 0.0
        %839 = vmatpush2.msra.mxu0 0.0
        %840 = vmatprep.subr.mxu0 0.0
        %841 = vmatpush2.msra.mxu0 0.0
        %842 = vmatprep.subr.mxu0 0.0
        %843 = vmatpush2.msra.mxu0 0.0
        %844 = vmatprep.subr.mxu0 0.0
        %845 = vmatpush2.msra.mxu0 0.0
        %846 = vmatprep.subr.mxu0 0.0
        %847 = vmatpush2.msra.mxu0 0.0
        %848 = vmatprep.subr.mxu0 0.0
        %849 = vmatpush2.msra.mxu0 0.0
        %850 = vmatprep.mubr.f32.mxu0 0.0
        %851 = vmatmul.mubr.f32.gmra.mxu0 %v752
        %v852 = vpop.f32.mrf.mxu0
        %v853 = vadd.f32 0.0, %v852
        %v854 = vpop.f32.mrf.mxu0
        %v855 = vadd.f32 0.0, %v854
        %856 = vdwg.mxu0
        %857 = vmatprep.subr.mxu0 %v751
        %858 = vmatpush1.msra.mxu0 %v750
        %859 = vmatprep.subr.mxu0 %v749
        %860 = vmatpush1.msra.mxu0 %v748
        %861 = vmatprep.subr.mxu0 %v747
        %862 = vmatpush1.msra.mxu0 %v746
        %863 = vmatprep.subr.mxu0 %v745
        %864 = vmatpush1.msra.mxu0 %v744
        %865 = vmatprep.subr.mxu0 %v743
        %866 = vmatpush1.msra.mxu0 %v742
        %867 = vmatprep.subr.mxu0 %v741
        %868 = vmatpush1.msra.mxu0 %v740
        %869 = vmatprep.subr.mxu0 %v739
        %870 = vmatpush1.msra.mxu0 %v738
        %871 = vmatprep.subr.mxu0 %v737
        %872 = vmatpush1.msra.mxu0 %v736
        %873 = vmatprep.subr.mxu0 %v735
        %874 = vmatpush1.msra.mxu0 %v734
        %875 = vmatprep.subr.mxu0 %v733
        %876 = vmatpush1.msra.mxu0 %v732
        %877 = vmatprep.subr.mxu0 %v731
        %878 = vmatpush1.msra.mxu0 %v730
        %879 = vmatprep.subr.mxu0 %v729
        %880 = vmatpush1.msra.mxu0 %v728
        %881 = vmatprep.subr.mxu0 %v727
        %882 = vmatpush1.msra.mxu0 %v726
        %883 = vmatprep.subr.mxu0 %v725
        %884 = vmatpush1.msra.mxu0 %v724
        %885 = vmatprep.subr.mxu0 %v723
        %886 = vmatpush1.msra.mxu0 %v722
        %887 = vmatprep.subr.mxu0 %v721
        %888 = vmatpush1.msra.mxu0 %v720
        %889 = vmatprep.subr.mxu0 0.0
        %890 = vmatpush2.msra.mxu0 0.0
        %891 = vmatprep.subr.mxu0 0.0
        %892 = vmatpush2.msra.mxu0 0.0
        %893 = vmatprep.subr.mxu0 0.0
        %894 = vmatpush2.msra.mxu0 0.0
        %895 = vmatprep.subr.mxu0 0.0
        %896 = vmatpush2.msra.mxu0 0.0
        %897 = vmatprep.subr.mxu0 0.0
        %898 = vmatpush2.msra.mxu0 0.0
        %899 = vmatprep.subr.mxu0 0.0
        %900 = vmatpush2.msra.mxu0 0.0
        %901 = vmatprep.subr.mxu0 0.0
        %902 = vmatpush2.msra.mxu0 0.0
        %903 = vmatprep.subr.mxu0 0.0
        %904 = vmatpush2.msra.mxu0 0.0
        %905 = vmatprep.subr.mxu0 0.0
        %906 = vmatpush2.msra.mxu0 0.0
        %907 = vmatprep.subr.mxu0 0.0
        %908 = vmatpush2.msra.mxu0 0.0
        %909 = vmatprep.subr.mxu0 0.0
        %910 = vmatpush2.msra.mxu0 0.0
        %911 = vmatprep.subr.mxu0 0.0
        %912 = vmatpush2.msra.mxu0 0.0
        %913 = vmatprep.subr.mxu0 0.0
        %914 = vmatpush2.msra.mxu0 0.0
        %915 = vmatprep.subr.mxu0 0.0
        %916 = vmatpush2.msra.mxu0 0.0
        %917 = vmatprep.subr.mxu0 0.0
        %918 = vmatpush2.msra.mxu0 0.0
        %919 = vmatprep.subr.mxu0 0.0
        %920 = vmatpush2.msra.mxu0 0.0
        %921 = vmatprep.mubr.f32.mxu0 0.0
        %922 = vmatmul.mubr.f32.gmra.mxu0 %v719
        %v923 = vpop.f32.mrf.mxu0
        %v924 = vadd.f32 %v853, %v923
        %v925 = vpop.f32.mrf.mxu0
        %v926 = vadd.f32 %v855, %v925
        %927 = vdwg.mxu0
        %v928 = vld [vmem:[#allocation2 + $0x2] sm:$0xff]
        %s929 = scalar_lea.vmem %s4, 512
        %v930 = vld [vmem:[%s929] sm:$0xff]
        %v931 = vld [vmem:[%s929 + $0x8] sm:$0xff]
        %v932 = vld [vmem:[%s929 + $0x10] sm:$0xff]
        %v933 = vld [vmem:[%s929 + $0x18] sm:$0xff]
        %v934 = vld [vmem:[%s929 + $0x20] sm:$0xff]
        %v935 = vld [vmem:[%s929 + $0x28] sm:$0xff]
        %v936 = vld [vmem:[%s929 + $0x30] sm:$0xff]
        %v937 = vld [vmem:[%s929 + $0x38] sm:$0xff]
        %v938 = vld [vmem:[%s929 + $0x40] sm:$0xff]
        %v939 = vld [vmem:[%s929 + $0x48] sm:$0xff]
        %v940 = vld [vmem:[%s929 + $0x50] sm:$0xff]
        %v941 = vld [vmem:[%s929 + $0x58] sm:$0xff]
        %v942 = vld [vmem:[%s929 + $0x60] sm:$0xff]
        %v943 = vld [vmem:[%s929 + $0x68] sm:$0xff]
        %v944 = vld [vmem:[%s929 + $0x70] sm:$0xff]
        %v945 = vld [vmem:[%s929 + $0x78] sm:$0xff]
        %v946 = vld [vmem:[%s929 + $0x80] sm:$0xff]
        %v947 = vld [vmem:[%s929 + $0x88] sm:$0xff]
        %v948 = vld [vmem:[%s929 + $0x90] sm:$0xff]
        %v949 = vld [vmem:[%s929 + $0x98] sm:$0xff]
        %v950 = vld [vmem:[%s929 + $0xa0] sm:$0xff]
        %v951 = vld [vmem:[%s929 + $0xa8] sm:$0xff]
        %v952 = vld [vmem:[%s929 + $0xb0] sm:$0xff]
        %v953 = vld [vmem:[%s929 + $0xb8] sm:$0xff]
        %v954 = vld [vmem:[%s929 + $0xc0] sm:$0xff]
        %v955 = vld [vmem:[%s929 + $0xc8] sm:$0xff]
        %v956 = vld [vmem:[%s929 + $0xd0] sm:$0xff]
        %v957 = vld [vmem:[%s929 + $0xd8] sm:$0xff]
        %v958 = vld [vmem:[%s929 + $0xe0] sm:$0xff]
        %v959 = vld [vmem:[%s929 + $0xe8] sm:$0xff]
        %v960 = vld [vmem:[%s929 + $0xf0] sm:$0xff]
        %v961 = vld [vmem:[%s929 + $0xf8] sm:$0xff]
        %962 = vmatprep.subr.mxu0 %v961
        %963 = vmatpush1.msra.mxu0 %v960
        %964 = vmatprep.subr.mxu0 %v959
        %965 = vmatpush1.msra.mxu0 %v958
        %966 = vmatprep.subr.mxu0 %v957
        %967 = vmatpush1.msra.mxu0 %v956
        %968 = vmatprep.subr.mxu0 %v955
        %969 = vmatpush1.msra.mxu0 %v954
        %970 = vmatprep.subr.mxu0 %v953
        %971 = vmatpush1.msra.mxu0 %v952
        %972 = vmatprep.subr.mxu0 %v951
        %973 = vmatpush1.msra.mxu0 %v950
        %974 = vmatprep.subr.mxu0 %v949
        %975 = vmatpush1.msra.mxu0 %v948
        %976 = vmatprep.subr.mxu0 %v947
        %977 = vmatpush1.msra.mxu0 %v946
        %978 = vmatprep.subr.mxu0 %v945
        %979 = vmatpush1.msra.mxu0 %v944
        %980 = vmatprep.subr.mxu0 %v943
        %981 = vmatpush1.msra.mxu0 %v942
        %982 = vmatprep.subr.mxu0 %v941
        %983 = vmatpush1.msra.mxu0 %v940
        %984 = vmatprep.subr.mxu0 %v939
        %985 = vmatpush1.msra.mxu0 %v938
        %986 = vmatprep.subr.mxu0 %v937
        %987 = vmatpush1.msra.mxu0 %v936
        %988 = vmatprep.subr.mxu0 %v935
        %989 = vmatpush1.msra.mxu0 %v934
        %990 = vmatprep.subr.mxu0 %v933
        %991 = vmatpush1.msra.mxu0 %v932
        %992 = vmatprep.subr.mxu0 %v931
        %993 = vmatpush1.msra.mxu0 %v930
        %994 = vmatprep.subr.mxu0 0.0
        %995 = vmatpush2.msra.mxu0 0.0
        %996 = vmatprep.subr.mxu0 0.0
        %997 = vmatpush2.msra.mxu0 0.0
        %998 = vmatprep.subr.mxu0 0.0
        %999 = vmatpush2.msra.mxu0 0.0
        %1000 = vmatprep.subr.mxu0 0.0
        %1001 = vmatpush2.msra.mxu0 0.0
        %1002 = vmatprep.subr.mxu0 0.0
        %1003 = vmatpush2.msra.mxu0 0.0
        %1004 = vmatprep.subr.mxu0 0.0
        %1005 = vmatpush2.msra.mxu0 0.0
        %1006 = vmatprep.subr.mxu0 0.0
        %1007 = vmatpush2.msra.mxu0 0.0
        %1008 = vmatprep.subr.mxu0 0.0
        %1009 = vmatpush2.msra.mxu0 0.0
        %1010 = vmatprep.subr.mxu0 0.0
        %1011 = vmatpush2.msra.mxu0 0.0
        %1012 = vmatprep.subr.mxu0 0.0
        %1013 = vmatpush2.msra.mxu0 0.0
        %1014 = vmatprep.subr.mxu0 0.0
        %1015 = vmatpush2.msra.mxu0 0.0
        %1016 = vmatprep.subr.mxu0 0.0
        %1017 = vmatpush2.msra.mxu0 0.0
        %1018 = vmatprep.subr.mxu0 0.0
        %1019 = vmatpush2.msra.mxu0 0.0
        %1020 = vmatprep.subr.mxu0 0.0
        %1021 = vmatpush2.msra.mxu0 0.0
        %1022 = vmatprep.subr.mxu0 0.0
        %1023 = vmatpush2.msra.mxu0 0.0
        %1024 = vmatprep.subr.mxu0 0.0
        %1025 = vmatpush2.msra.mxu0 0.0
        %1026 = vmatprep.mubr.f32.mxu0 0.0
        %1027 = vmatmul.mubr.f32.gmra.mxu0 %v928
        %v1028 = vpop.f32.mrf.mxu0
        %v1029 = vadd.f32 0.0, %v1028
        %v1030 = vpop.f32.mrf.mxu0
        %v1031 = vadd.f32 0.0, %v1030
        %1032 = vdwg.mxu0
        %v1033 = vadd.f32 %v924, %v1029
        %v1034 = vadd.f32 %v926, %v1031
        %v1035 = vld [vmem:[%s5] sm:$0x3]
        %v1037 = vlaneseq
        %v1038 = vshrl.u32 %v1037, 7
        %v1039 = vsub.s32 0, %v1038
        %v1040 = vrot.slane %v1035, %v1039
        %v1041 = vlaneseq
        %v1042 = vshrl.u32 %v1041, 7
        %v1043 = vsub.s32 1, %v1042
        %v1044 = vrot.slane %v1035, %v1043
        %v1047 = vmul.f32 %v1033, %v1040
        %v1048 = vmul.f32 %v1034, %v1044
        %v1049 = vld [vmem:[%s6] sm:$0x3]
        %v1051 = vlaneseq
        %v1052 = vshrl.u32 %v1051, 7
        %v1053 = vsub.s32 0, %v1052
        %v1054 = vrot.slane %v1049, %v1053
        %v1055 = vlaneseq
        %v1056 = vshrl.u32 %v1055, 7
        %v1057 = vsub.s32 1, %v1056
        %v1058 = vrot.slane %v1049, %v1057
        %v1061 = vadd.f32 %v1047, %v1054
        %v1062 = vadd.f32 %v1048, %v1058
        %v1063 = vmax.f32 %v1061, 0.0
        %v1064 = vmax.f32 %v1062, 0.0
        %v1065 = vmax.f32 %v1063, %v1064
        %v1067 = vrot.slane %v1065, 1
        %v1069 = vmax.f32 %v1065, %v1067
        %v1070 = vlaneseq
        %vm1071 = vcmp.ge.s32.totalorder %v1070, 0
        %vm1072 = vcmp.lt.s32.totalorder %v1070, 128
        %vm1073 = vmand %vm1071, %vm1072
        %1074 = vst.msk [vmem:[#allocation3] sm:$0x1] %vm1073, %v1069
        %v1077 = vunpack.c.l.s4 1966171168
        %v1078 = vunpack.c.0.s8 %v1077
        %v1079 = vlaneseq
        %v1080 = vshrl.u32 %v1079, 7
        %v1081 = vsub.s32 %v1078, %v1080
        %v1082 = vrot.slane %v1069, %v1081
        %v1084 = vunpack.c.l.s4 1966171168
        %v1085 = vunpack.c.0.s8 %v1084
        %v1086 = vlaneseq
        %v1087 = vshrl.u32 %v1086, 7
        %v1088 = vsub.s32 %v1085, %v1087
        %v1089 = vrot.slane %v1082, %v1088
        %v1090 = vcombine.high %v1089, %v1089
        %1092 = vst.msk [vmem:[#allocation3 + $0x1] sm:$0x1] %vm1073, %v1090
        %v1093 = vcombine.high %v1069, %v1069
        %v1095 = vunpack.c.l.s4 1966171168
        %v1096 = vunpack.c.0.s8 %v1095
        %v1097 = vlaneseq
        %v1098 = vshrl.u32 %v1097, 7
        %v1099 = vsub.s32 %v1096, %v1098
        %v1100 = vrot.slane %v1093, %v1099
        %v1102 = vunpack.c.l.s4 1966171168
        %v1103 = vunpack.c.0.s8 %v1102
        %v1104 = vlaneseq
        %v1105 = vshrl.u32 %v1104, 7
        %v1106 = vsub.s32 %v1103, %v1105
        %v1107 = vrot.slane %v1100, %v1106
        %1109 = vst.msk [vmem:[#allocation3 + $0x2] sm:$0x1] %vm1073, %v1107
        %v1110 = vcombine.high %v1107, %v1107
        %1112 = vst.msk [vmem:[#allocation3 + $0x3] sm:$0x1] %vm1073, %v1110
        %v1113 = vld [vmem:[#allocation3] sm:$0xf]
        %v1114 = vld [vmem:[%s7] sm:$0xff]
        %v1115 = vld [vmem:[%s7 + $0x8] sm:$0xff]
        %v1116 = vld [vmem:[%s7 + $0x10] sm:$0xff]
        %v1117 = vld [vmem:[%s7 + $0x18] sm:$0xff]
        %v1118 = vld [vmem:[%s7 + $0x20] sm:$0xff]
        %v1119 = vld [vmem:[%s7 + $0x28] sm:$0xff]
        %v1120 = vld [vmem:[%s7 + $0x30] sm:$0xff]
        %v1121 = vld [vmem:[%s7 + $0x38] sm:$0xff]
        %v1122 = vld [vmem:[%s7 + $0x40] sm:$0xff]
        %v1123 = vld [vmem:[%s7 + $0x48] sm:$0xff]
        %v1124 = vld [vmem:[%s7 + $0x50] sm:$0xff]
        %v1125 = vld [vmem:[%s7 + $0x58] sm:$0xff]
        %v1126 = vld [vmem:[%s7 + $0x60] sm:$0xff]
        %v1127 = vld [vmem:[%s7 + $0x68] sm:$0xff]
        %v1128 = vld [vmem:[%s7 + $0x70] sm:$0xff]
        %v1129 = vld [vmem:[%s7 + $0x78] sm:$0xff]
        %v1130 = vld [vmem:[%s7 + $0x80] sm:$0xff]
        %v1131 = vld [vmem:[%s7 + $0x88] sm:$0xff]
        %v1132 = vld [vmem:[%s7 + $0x90] sm:$0xff]
        %v1133 = vld [vmem:[%s7 + $0x98] sm:$0xff]
        %v1134 = vld [vmem:[%s7 + $0xa0] sm:$0xff]
        %v1135 = vld [vmem:[%s7 + $0xa8] sm:$0xff]
        %v1136 = vld [vmem:[%s7 + $0xb0] sm:$0xff]
        %v1137 = vld [vmem:[%s7 + $0xb8] sm:$0xff]
        %v1138 = vld [vmem:[%s7 + $0xc0] sm:$0xff]
        %v1139 = vld [vmem:[%s7 + $0xc8] sm:$0xff]
        %v1140 = vld [vmem:[%s7 + $0xd0] sm:$0xff]
        %v1141 = vld [vmem:[%s7 + $0xd8] sm:$0xff]
        %v1142 = vld [vmem:[%s7 + $0xe0] sm:$0xff]
        %v1143 = vld [vmem:[%s7 + $0xe8] sm:$0xff]
        %v1144 = vld [vmem:[%s7 + $0xf0] sm:$0xff]
        %v1145 = vld [vmem:[%s7 + $0xf8] sm:$0xff]
        %v1146 = vld [vmem:[%s7 + $0x100] sm:$0xff]
        %v1147 = vld [vmem:[%s7 + $0x108] sm:$0xff]
        %v1148 = vld [vmem:[%s7 + $0x110] sm:$0xff]
        %v1149 = vld [vmem:[%s7 + $0x118] sm:$0xff]
        %v1150 = vld [vmem:[%s7 + $0x120] sm:$0xff]
        %v1151 = vld [vmem:[%s7 + $0x128] sm:$0xff]
        %v1152 = vld [vmem:[%s7 + $0x130] sm:$0xff]
        %v1153 = vld [vmem:[%s7 + $0x138] sm:$0xff]
        %v1154 = vld [vmem:[%s7 + $0x140] sm:$0xff]
        %v1155 = vld [vmem:[%s7 + $0x148] sm:$0xff]
        %v1156 = vld [vmem:[%s7 + $0x150] sm:$0xff]
        %v1157 = vld [vmem:[%s7 + $0x158] sm:$0xff]
        %v1158 = vld [vmem:[%s7 + $0x160] sm:$0xff]
        %v1159 = vld [vmem:[%s7 + $0x168] sm:$0xff]
        %v1160 = vld [vmem:[%s7 + $0x170] sm:$0xff]
        %v1161 = vld [vmem:[%s7 + $0x178] sm:$0xff]
        %v1162 = vld [vmem:[%s7 + $0x180] sm:$0xff]
        %v1163 = vld [vmem:[%s7 + $0x188] sm:$0xff]
        %v1164 = vld [vmem:[%s7 + $0x190] sm:$0xff]
        %v1165 = vld [vmem:[%s7 + $0x198] sm:$0xff]
        %v1166 = vld [vmem:[%s7 + $0x1a0] sm:$0xff]
        %v1167 = vld [vmem:[%s7 + $0x1a8] sm:$0xff]
        %v1168 = vld [vmem:[%s7 + $0x1b0] sm:$0xff]
        %v1169 = vld [vmem:[%s7 + $0x1b8] sm:$0xff]
        %v1170 = vld [vmem:[%s7 + $0x1c0] sm:$0xff]
        %v1171 = vld [vmem:[%s7 + $0x1c8] sm:$0xff]
        %v1172 = vld [vmem:[%s7 + $0x1d0] sm:$0xff]
        %v1173 = vld [vmem:[%s7 + $0x1d8] sm:$0xff]
        %v1174 = vld [vmem:[%s7 + $0x1e0] sm:$0xff]
        %v1175 = vld [vmem:[%s7 + $0x1e8] sm:$0xff]
        %v1176 = vld [vmem:[%s7 + $0x1f0] sm:$0xff]
        %v1177 = vld [vmem:[%s7 + $0x1f8] sm:$0xff]
        %v1178 = vld [vmem:[%s8] sm:$0x1]
        %v1180 = vlaneseq
        %v1181 = vshrl.u32 %v1180, 7
        %v1182 = vsub.s32 0, %v1181
        %v1183 = vrot.slane %v1113, %v1182
        %v1184 = vlaneseq
        %v1185 = vshrl.u32 %v1184, 7
        %v1186 = vsub.s32 1, %v1185
        %v1187 = vrot.slane %v1113, %v1186
        %v1188 = vlaneseq
        %v1189 = vshrl.u32 %v1188, 7
        %v1190 = vsub.s32 2, %v1189
        %v1191 = vrot.slane %v1113, %v1190
        %v1192 = vlaneseq
        %v1193 = vshrl.u32 %v1192, 7
        %v1194 = vsub.s32 3, %v1193
        %v1195 = vrot.slane %v1113, %v1194
        %1200 = vmatprep.subr.mxu0 0.0
        %1201 = vmatpush1.msra.mxu0 %v1129
        %1202 = vmatprep.subr.mxu0 0.0
        %1203 = vmatpush1.msra.mxu0 %v1128
        %1204 = vmatprep.subr.mxu0 0.0
        %1205 = vmatpush1.msra.mxu0 %v1127
        %1206 = vmatprep.subr.mxu0 0.0
        %1207 = vmatpush1.msra.mxu0 %v1126
        %1208 = vmatprep.subr.mxu0 0.0
        %1209 = vmatpush1.msra.mxu0 %v1125
        %1210 = vmatprep.subr.mxu0 0.0
        %1211 = vmatpush1.msra.mxu0 %v1124
        %1212 = vmatprep.subr.mxu0 0.0
        %1213 = vmatpush1.msra.mxu0 %v1123
        %1214 = vmatprep.subr.mxu0 0.0
        %1215 = vmatpush1.msra.mxu0 %v1122
        %1216 = vmatprep.subr.mxu0 0.0
        %1217 = vmatpush1.msra.mxu0 %v1121
        %1218 = vmatprep.subr.mxu0 0.0
        %1219 = vmatpush1.msra.mxu0 %v1120
        %1220 = vmatprep.subr.mxu0 0.0
        %1221 = vmatpush1.msra.mxu0 %v1119
        %1222 = vmatprep.subr.mxu0 0.0
        %1223 = vmatpush1.msra.mxu0 %v1118
        %1224 = vmatprep.subr.mxu0 0.0
        %1225 = vmatpush1.msra.mxu0 %v1117
        %1226 = vmatprep.subr.mxu0 0.0
        %1227 = vmatpush1.msra.mxu0 %v1116
        %1228 = vmatprep.subr.mxu0 0.0
        %1229 = vmatpush1.msra.mxu0 %v1115
        %1230 = vmatprep.subr.mxu0 0.0
        %1231 = vmatpush1.msra.mxu0 %v1114
        %1232 = vmatprep.subr.mxu0 0.0
        %1233 = vmatpush2.msra.mxu0 %v1145
        %1234 = vmatprep.subr.mxu0 0.0
        %1235 = vmatpush2.msra.mxu0 %v1144
        %1236 = vmatprep.subr.mxu0 0.0
        %1237 = vmatpush2.msra.mxu0 %v1143
        %1238 = vmatprep.subr.mxu0 0.0
        %1239 = vmatpush2.msra.mxu0 %v1142
        %1240 = vmatprep.subr.mxu0 0.0
        %1241 = vmatpush2.msra.mxu0 %v1141
        %1242 = vmatprep.subr.mxu0 0.0
        %1243 = vmatpush2.msra.mxu0 %v1140
        %1244 = vmatprep.subr.mxu0 0.0
        %1245 = vmatpush2.msra.mxu0 %v1139
        %1246 = vmatprep.subr.mxu0 0.0
        %1247 = vmatpush2.msra.mxu0 %v1138
        %1248 = vmatprep.subr.mxu0 0.0
        %1249 = vmatpush2.msra.mxu0 %v1137
        %1250 = vmatprep.subr.mxu0 0.0
        %1251 = vmatpush2.msra.mxu0 %v1136
        %1252 = vmatprep.subr.mxu0 0.0
        %1253 = vmatpush2.msra.mxu0 %v1135
        %1254 = vmatprep.subr.mxu0 0.0
        %1255 = vmatpush2.msra.mxu0 %v1134
        %1256 = vmatprep.subr.mxu0 0.0
        %1257 = vmatpush2.msra.mxu0 %v1133
        %1258 = vmatprep.subr.mxu0 0.0
        %1259 = vmatpush2.msra.mxu0 %v1132
        %1260 = vmatprep.subr.mxu0 0.0
        %1261 = vmatpush2.msra.mxu0 %v1131
        %1262 = vmatprep.subr.mxu0 0.0
        %1263 = vmatpush2.msra.mxu0 %v1130
        %1264 = vmatprep.mubr.f32.mxu0 %v1187
        %1265 = vmatmul.mubr.f32.gmra.mxu0 %v1183
        %v1266 = vpop.f32.mrf.mxu0
        %v1267 = vadd.f32 %v1178, %v1266
        %v1268 = vpop.f32.mrf.mxu0
        %1269 = vdwg.mxu0
        %1270 = vmatprep.subr.mxu0 0.0
        %1271 = vmatpush1.msra.mxu0 %v1161
        %1272 = vmatprep.subr.mxu0 0.0
        %1273 = vmatpush1.msra.mxu0 %v1160
        %1274 = vmatprep.subr.mxu0 0.0
        %1275 = vmatpush1.msra.mxu0 %v1159
        %1276 = vmatprep.subr.mxu0 0.0
        %1277 = vmatpush1.msra.mxu0 %v1158
        %1278 = vmatprep.subr.mxu0 0.0
        %1279 = vmatpush1.msra.mxu0 %v1157
        %1280 = vmatprep.subr.mxu0 0.0
        %1281 = vmatpush1.msra.mxu0 %v1156
        %1282 = vmatprep.subr.mxu0 0.0
        %1283 = vmatpush1.msra.mxu0 %v1155
        %1284 = vmatprep.subr.mxu0 0.0
        %1285 = vmatpush1.msra.mxu0 %v1154
        %1286 = vmatprep.subr.mxu0 0.0
        %1287 = vmatpush1.msra.mxu0 %v1153
        %1288 = vmatprep.subr.mxu0 0.0
        %1289 = vmatpush1.msra.mxu0 %v1152
        %1290 = vmatprep.subr.mxu0 0.0
        %1291 = vmatpush1.msra.mxu0 %v1151
        %1292 = vmatprep.subr.mxu0 0.0
        %1293 = vmatpush1.msra.mxu0 %v1150
        %1294 = vmatprep.subr.mxu0 0.0
        %1295 = vmatpush1.msra.mxu0 %v1149
        %1296 = vmatprep.subr.mxu0 0.0
        %1297 = vmatpush1.msra.mxu0 %v1148
        %1298 = vmatprep.subr.mxu0 0.0
        %1299 = vmatpush1.msra.mxu0 %v1147
        %1300 = vmatprep.subr.mxu0 0.0
        %1301 = vmatpush1.msra.mxu0 %v1146
        %1302 = vmatprep.subr.mxu0 0.0
        %1303 = vmatpush2.msra.mxu0 %v1177
        %1304 = vmatprep.subr.mxu0 0.0
        %1305 = vmatpush2.msra.mxu0 %v1176
        %1306 = vmatprep.subr.mxu0 0.0
        %1307 = vmatpush2.msra.mxu0 %v1175
        %1308 = vmatprep.subr.mxu0 0.0
        %1309 = vmatpush2.msra.mxu0 %v1174
        %1310 = vmatprep.subr.mxu0 0.0
        %1311 = vmatpush2.msra.mxu0 %v1173
        %1312 = vmatprep.subr.mxu0 0.0
        %1313 = vmatpush2.msra.mxu0 %v1172
        %1314 = vmatprep.subr.mxu0 0.0
        %1315 = vmatpush2.msra.mxu0 %v1171
        %1316 = vmatprep.subr.mxu0 0.0
        %1317 = vmatpush2.msra.mxu0 %v1170
        %1318 = vmatprep.subr.mxu0 0.0
        %1319 = vmatpush2.msra.mxu0 %v1169
        %1320 = vmatprep.subr.mxu0 0.0
        %1321 = vmatpush2.msra.mxu0 %v1168
        %1322 = vmatprep.subr.mxu0 0.0
        %1323 = vmatpush2.msra.mxu0 %v1167
        %1324 = vmatprep.subr.mxu0 0.0
        %1325 = vmatpush2.msra.mxu0 %v1166
        %1326 = vmatprep.subr.mxu0 0.0
        %1327 = vmatpush2.msra.mxu0 %v1165
        %1328 = vmatprep.subr.mxu0 0.0
        %1329 = vmatpush2.msra.mxu0 %v1164
        %1330 = vmatprep.subr.mxu0 0.0
        %1331 = vmatpush2.msra.mxu0 %v1163
        %1332 = vmatprep.subr.mxu0 0.0
        %1333 = vmatpush2.msra.mxu0 %v1162
        %1334 = vmatprep.mubr.f32.mxu0 %v1195
        %1335 = vmatmul.mubr.f32.gmra.mxu0 %v1191
        %v1336 = vpop.f32.mrf.mxu0
        %v1337 = vadd.f32 %v1267, %v1336
        %v1338 = vpop.f32.mrf.mxu0
        %1339 = vdwg.mxu0
        %v1340 = vmax.f32 %v1337, 0.0
        %v1341 = vld [vmem:[%s9] sm:$0xff]
        %v1342 = vld [vmem:[%s9 + $0x8] sm:$0xff]
        %v1343 = vld [vmem:[%s9 + $0x10] sm:$0xff]
        %v1344 = vld [vmem:[%s9 + $0x18] sm:$0xff]
        %v1345 = vld [vmem:[%s9 + $0x20] sm:$0xff]
        %v1346 = vld [vmem:[%s9 + $0x28] sm:$0xff]
        %v1347 = vld [vmem:[%s9 + $0x30] sm:$0xff]
        %v1348 = vld [vmem:[%s9 + $0x38] sm:$0xff]
        %v1349 = vld [vmem:[%s9 + $0x40] sm:$0xff]
        %v1350 = vld [vmem:[%s9 + $0x48] sm:$0xff]
        %v1351 = vld [vmem:[%s9 + $0x50] sm:$0xff]
        %v1352 = vld [vmem:[%s9 + $0x58] sm:$0xff]
        %v1353 = vld [vmem:[%s9 + $0x60] sm:$0xff]
        %v1354 = vld [vmem:[%s9 + $0x68] sm:$0xff]
        %v1355 = vld [vmem:[%s9 + $0x70] sm:$0xff]
        %v1356 = vld [vmem:[%s9 + $0x78] sm:$0xff]
        %v1357 = vld [vmem:[%s10] sm:$0x1]
        %1358 = vmatprep.subr.mxu0 0.0
        %1359 = vmatpush1.msra.mxu0 %v1356
        %1360 = vmatprep.subr.mxu0 0.0
        %1361 = vmatpush1.msra.mxu0 %v1355
        %1362 = vmatprep.subr.mxu0 0.0
        %1363 = vmatpush1.msra.mxu0 %v1354
        %1364 = vmatprep.subr.mxu0 0.0
        %1365 = vmatpush1.msra.mxu0 %v1353
        %1366 = vmatprep.subr.mxu0 0.0
        %1367 = vmatpush1.msra.mxu0 %v1352
        %1368 = vmatprep.subr.mxu0 0.0
        %1369 = vmatpush1.msra.mxu0 %v1351
        %1370 = vmatprep.subr.mxu0 0.0
        %1371 = vmatpush1.msra.mxu0 %v1350
        %1372 = vmatprep.subr.mxu0 0.0
        %1373 = vmatpush1.msra.mxu0 %v1349
        %1374 = vmatprep.subr.mxu0 0.0
        %1375 = vmatpush1.msra.mxu0 %v1348
        %1376 = vmatprep.subr.mxu0 0.0
        %1377 = vmatpush1.msra.mxu0 %v1347
        %1378 = vmatprep.subr.mxu0 0.0
        %1379 = vmatpush1.msra.mxu0 %v1346
        %1380 = vmatprep.subr.mxu0 0.0
        %1381 = vmatpush1.msra.mxu0 %v1345
        %1382 = vmatprep.subr.mxu0 0.0
        %1383 = vmatpush1.msra.mxu0 %v1344
        %1384 = vmatprep.subr.mxu0 0.0
        %1385 = vmatpush1.msra.mxu0 %v1343
        %1386 = vmatprep.subr.mxu0 0.0
        %1387 = vmatpush1.msra.mxu0 %v1342
        %1388 = vmatprep.subr.mxu0 0.0
        %1389 = vmatpush1.msra.mxu0 %v1341
        %1390 = vmatprep.subr.mxu0 0.0
        %1391 = vmatpush2.msra.mxu0 0.0
        %1392 = vmatprep.subr.mxu0 0.0
        %1393 = vmatpush2.msra.mxu0 0.0
        %1394 = vmatprep.subr.mxu0 0.0
        %1395 = vmatpush2.msra.mxu0 0.0
        %1396 = vmatprep.subr.mxu0 0.0
        %1397 = vmatpush2.msra.mxu0 0.0
        %1398 = vmatprep.subr.mxu0 0.0
        %1399 = vmatpush2.msra.mxu0 0.0
        %1400 = vmatprep.subr.mxu0 0.0
        %1401 = vmatpush2.msra.mxu0 0.0
        %1402 = vmatprep.subr.mxu0 0.0
        %1403 = vmatpush2.msra.mxu0 0.0
        %1404 = vmatprep.subr.mxu0 0.0
        %1405 = vmatpush2.msra.mxu0 0.0
        %1406 = vmatprep.subr.mxu0 0.0
        %1407 = vmatpush2.msra.mxu0 0.0
        %1408 = vmatprep.subr.mxu0 0.0
        %1409 = vmatpush2.msra.mxu0 0.0
        %1410 = vmatprep.subr.mxu0 0.0
        %1411 = vmatpush2.msra.mxu0 0.0
        %1412 = vmatprep.subr.mxu0 0.0
        %1413 = vmatpush2.msra.mxu0 0.0
        %1414 = vmatprep.subr.mxu0 0.0
        %1415 = vmatpush2.msra.mxu0 0.0
        %1416 = vmatprep.subr.mxu0 0.0
        %1417 = vmatpush2.msra.mxu0 0.0
        %1418 = vmatprep.subr.mxu0 0.0
        %1419 = vmatpush2.msra.mxu0 0.0
        %1420 = vmatprep.subr.mxu0 0.0
        %1421 = vmatpush2.msra.mxu0 0.0
        %1422 = vmatprep.mubr.f32.mxu0 0.0
        %1423 = vmatmul.mubr.f32.gmra.mxu0 %v1340
        %v1424 = vpop.f32.mrf.mxu0
        %v1425 = vadd.f32 %v1357, %v1424
        %v1426 = vpop.f32.mrf.mxu0
        %1427 = vdwg.mxu0
        %vm1428 = vcmask 57344
        %1429 = vst.msk [vmem:[%s378] sm:$0x1] %vm1428, %v1425
        %s1430 = sand.u32 %s269, 1
        %s1431 = scalar_lea.sflag [#allocation5], %s1430
        %s1432 = sand.u32 %s269, 1
        %s1433 = scalar_lea.vmem [#allocation4], %s1432
        // Predicated region
        $region65: #{audio_cnn_forward.1} parent=63 // pred_check
          %p1434 = pneg %p279
        $region66: #{audio_cnn_forward.1} parent=63 // pred_check_branch
          %1436 = sbr.rel (%p1434) target = $region68
        $region67: #{audio_cnn_forward.1} parent=63 // pred_region
          %s1438 = ssub.s32 16, 16
          %1439 = vsyncadd %s1431, %s1438
          %s1440 = smul.addr %s25, 16
          %s1441 = scalar_lea.hbm %s11, %s1440
          %s1443 = sshll.u32 %s1433, 4
          %s1444 = int_to_ptr.vmem [resolvable:$true] %s1443
          %1446 = dma.vmem_to_hbm [thread:$0]  %s1444, 16, %s1441, %s1431
        $region68: #{audio_cnn_forward.1} parent=63 // pred_fallthru
          _
      $region64: #{audio_cnn_forward.1} parent=5 // pred_fallthru
        _
      %p1447 = scmp.le.s32.totalorder 2, %s20
      // Predicated region
      $region69: #{audio_cnn_forward.1} parent=5 // pred_check
        %p1448 = pneg %p1447
      $region70: #{audio_cnn_forward.1} parent=5 // pred_check_branch
        %1450 = sbr.rel (%p1448) target = $region72
      $region71: #{audio_cnn_forward.1} parent=5 // pred_region
        %s1451 = ssub.s32 %s20, 2
        // Predicated region
        $region73: #{audio_cnn_forward.1} parent=71 // pred_check
          %p1452 = pneg %p285
        $region74: #{audio_cnn_forward.1} parent=71 // pred_check_branch
          %1454 = sbr.rel (%p1452) target = $region76
        $region75: #{audio_cnn_forward.1} parent=71 // pred_region
          %s1455 = sand.u32 %s270, 1
          %s1456 = scalar_lea.sflag [#allocation5], %s1455
          %s1457 = sand.u32 %s270, 1
          %s1458 = scalar_lea.vmem [#allocation4], %s1457
          %1459 = dma.done %s1456, 16
        $region76: #{audio_cnn_forward.1} parent=71 // pred_fallthru
          _
      $region72: #{audio_cnn_forward.1} parent=5 // pred_fallthru
        _
    $region6: #{audio_cnn_forward.1} parent=1 // loop_footer
      %s24 = sadd.s32 1, %s20
    $region7: #{audio_cnn_forward.1} parent=1 // loop_footer_branch
      %19 = sbr.rel target = $region3
    $region8: #{audio_cnn_forward.1} parent=1 // loop_exit
      _
    %1460 = vsyncpa [#allocation5], 1
    %s1461 = scalar_lea.sflag [#allocation5], 1
    %1462 = vsyncpa %s1461, 1

</llo_original>
